<compile_context>
chip_gen: v7x
topology: tpu7x:2x2x1
jax: 0.10.0
libtpu: 0.0.40
codegen_flags: <defaults>
</compile_context>

<pallas_src>
import functools

import jax
import jax.numpy as jnp
from jax.experimental import pallas as pl
from jax.experimental.pallas import tpu as pltpu

EPS = 1e-5  # nn.InstanceNorm2d default eps


def _round_up(x, m):
    return (x + m - 1) // m * m


def _cdiv(a, b):
    return -(-a // b)


def _conv_in_silu_kernel(xa_ref, xb_ref, w_ref, mask_ref, o_ref,
                         acc_ref, sum_ref, *, k, wp, n_valid, eps, n_chunks):
    """Grid = (N, Cout tiles, P tiles); output block resident across the P axis.

    xa_ref:   (Cin, TP)          bf16  lanes [p*TP, (p+1)*TP) of the flat padded plane
    xb_ref:   (Cin, TP)          bf16  lanes [(p+1)*TP, (p+2)*TP)  (halo tile)
    w_ref:    (k*k, BCout, Cin)  bf16  weights; [i*k+j] -> W[:, :, i, j]
    mask_ref: (1, Pw_pad)        f32   1.0 on valid output lanes, 0.0 elsewhere
    o_ref:    (BCout, Pw_pad)    bf16  resident wide-output block
    acc_ref:  (BCout, TP)        f32   conv tile accumulator   (VMEM scratch)
    sum_ref:  (BCout, 1)         f32   streaming masked sum    (VMEM scratch)
    """
    p = pl.program_id(2)
    tp = acc_ref.shape[-1]

    @pl.when(p == 0)
    def _():
        sum_ref[...] = jnp.zeros_like(sum_ref)

    # Halo'd window of the flat padded plane: lanes [p*TP, p*TP + 2*TP).
    xw = jnp.concatenate([xa_ref[...], xb_ref[...]], axis=-1)          # (Cin, 2*TP)

    # Conv = k*k lane-shifted (BCout, Cin) x (Cin, TP) MXU matmuls:
    # wide-output lane q (= r*Wp + c) needs input lane q + i*Wp + j.
    acc_ref[...] = jnp.zeros_like(acc_ref)
    for i in range(k):
        for j in range(k):
            sh = i * wp + j
            acc_ref[...] += jnp.dot(w_ref[i * k + j, :, :], xw[:, sh:sh + tp],
                                    preferred_element_type=jnp.float32)

    start = pl.multiple_of(p * tp, tp)
    y = acc_ref[...]
    msk = mask_ref[:, pl.ds(start, tp)]
    # Streaming (masked) sum for the mean; variance is two-pass (epilogue).
    sum_ref[...] += jnp.sum(y * msk, axis=1, keepdims=True)
    # Stash the raw conv tile into the resident output block (bf16, lane-dense).
    o_ref[:, pl.ds(start, tp)] = y.astype(o_ref.dtype)

    # Last spatial step: two-pass InstanceNorm + SiLU over the resident block,
    # chunk-by-chunk (bounded vreg pressure, no monolithic full-plane temp).
    # n_chunks is static, so these Python loops are unrolled at trace time;
    # for very large n_chunks switch to lax.fori_loop(..., unroll=True).
    @pl.when(p == pl.num_programs(2) - 1)
    def _():
        inv_n = 1.0 / n_valid
        mean = sum_ref[...] * inv_n                                     # (BCout, 1)

        ssq = jnp.zeros(mean.shape, jnp.float32)
        for c in range(n_chunks):
            yy = o_ref[:, c * tp:(c + 1) * tp].astype(jnp.float32)
            d = (yy - mean) * mask_ref[:, c * tp:(c + 1) * tp]
            ssq = ssq + jnp.sum(d * d, axis=1, keepdims=True)
        inv_std = jax.lax.rsqrt(ssq * inv_n + eps)                      # (BCout, 1)

        for c in range(n_chunks):
            yy = o_ref[:, c * tp:(c + 1) * tp].astype(jnp.float32)
            z = (yy - mean) * inv_std
            o_ref[:, c * tp:(c + 1) * tp] = (z * jax.nn.sigmoid(z)).astype(o_ref.dtype)


def _vmem_capacity_bytes():
    try:
        return int(pltpu.get_tpu_info().vmem_capacity_bytes)
    except Exception:
        return 64 * 1024 * 1024          # v7x floor; v5e/v6e have 128 MiB


def _choose_tiles(Cin, Cout, k, Wp, Pw, block_p=None):
    """Pick lane/channel tiles from the per-generation VMEM capacity."""
    vmem_cap = _vmem_capacity_bytes()
    budget = int(vmem_cap * 0.75)

    # The shifted views need lanes [p*TP, p*TP + TP + halo); the halo is
    # covered by also fetching the next lane tile, so require TP >= halo.
    halo = (k - 1) * (Wp + 1)
    min_bp = _round_up(max(halo, 128), 128)

    tp_cap = max(2048, min_bp) if block_p is None else max(_round_up(block_p, 128), min_bp)
    n_p = max(1, _cdiv(Pw, tp_cap))
    bp = max(_round_up(_cdiv(Pw, n_p), 128), min_bp)   # balanced: pad < 128 lanes
    n_p = max(1, _cdiv(Pw, bp))
    pw_pad = n_p * bp

    # VMEM per step: input halo pair (2 specs x 2 bufs, bf16) + resident mask
    # (fixed), plus per-Cout-row: resident bf16 output (x2 bufs), f32 acc,
    # double-buffered weights.
    fixed = 2 * 2 * Cin * bp * 2 + 2 * pw_pad * 4
    per_cout = 4 * pw_pad + 4 * bp + 4 * k * k * Cin
    cb_max = max(8, (budget - fixed) // max(per_cout, 1))
    n_co = max(1, _cdiv(Cout, cb_max))
    cb = _round_up(_cdiv(Cout, n_co), 8)   # multiples of 256 are ideal for the MXU
    n_co = _cdiv(Cout, cb)
    cout_pad = n_co * cb
    return bp, n_p, pw_pad, cb, n_co, cout_pad, vmem_cap


@functools.partial(jax.jit,
                   static_argnames=("kernel_size", "stride", "padding", "block_p"))
def conv2d_block(x, weight, bias, *, kernel_size, stride, padding, block_p=None):
    """Conv2dBlock (sn=False, norm='IN', activ='SiLU') forward.

    x: (N, Cin, H, W) fp32;  weight: (Cout, Cin, k, k);  bias: (Cout,).
    The conv bias is annihilated exactly by InstanceNorm2d's mean subtraction
    (valid ONLY for the norm='IN' configuration).
    """
    del bias
    N, Cin, H, W = x.shape
    Cout = weight.shape[0]
    k = kernel_size
    s = stride

    # ReflectionPad2d(padding); cast to bf16 before any further materialization.
    xp = jnp.pad(x, ((0, 0), (0, 0), (padding, padding), (padding, padding)),
                 mode="reflect").astype(jnp.bfloat16)
    Hp, Wp = H + 2 * padding, W + 2 * padding
    Ho = (Hp - k) // s + 1
    Wo = (Wp - k) // s + 1

    # "Wide output": compute the stride-1 conv at every padded column (row
    # stride Wp on both sides), so the k*k shifted views are plain lane-offset
    # slices of the flat plane.  Wrap-around columns / skipped strided lanes
    # are masked out of the moments and sliced away afterwards.
    # TODO(synk): for stride>1 this computes ~stride^2 more lanes than needed.
    Hw = (Ho - 1) * s + 1
    Pw = Hw * Wp
    L = Hp * Wp

    bp, n_p, pw_pad, cb, n_co, cout_pad, vmem_cap = _choose_tiles(
        Cin, Cout, k, Wp, Pw, block_p)

    # Flat padded plane, lane-padded so that input block index p+1 always exists.
    # TODO(synk): the next-tile halo re-fetch (~2x input reads) could be removed
    # with a manual DMA pipeline that carries the halo across grid steps.
    x_flat = xp.reshape(N, Cin, L)
    L_in = (n_p + 1) * bp
    if L_in >= L:
        x_flat = jnp.pad(x_flat, ((0, 0), (0, 0), (0, L_in - L)))
    else:
        x_flat = x_flat[:, :, :L_in]

    # Weights as (k*k, Cout_pad, Cin): [i*k + j] -> W[:, :, i, j].
    w_r = jnp.transpose(weight, (2, 3, 0, 1)).reshape(k * k, Cout, Cin)
    w_r = jnp.pad(w_r, ((0, 0), (0, cout_pad - Cout), (0, 0))).astype(jnp.bfloat16)

    # Valid-lane mask over the wide output plane (resident in VMEM).
    r = jnp.arange(Hw)
    c = jnp.arange(Wp)
    row_ok = (r % s) == 0
    col_ok = ((c % s) == 0) & (c <= (Wo - 1) * s)
    mask = (row_ok[:, None] & col_ok[None, :]).astype(jnp.float32).reshape(1, Pw)
    mask = jnp.pad(mask, ((0, 0), (0, pw_pad - Pw)))

    kernel = functools.partial(_conv_in_silu_kernel, k=k, wp=Wp,
                               n_valid=float(Ho * Wo), eps=EPS, n_chunks=n_p)

    out = pl.pallas_call(
        kernel,
        out_shape=jax.ShapeDtypeStruct((N, cout_pad, pw_pad), jnp.bfloat16),
        grid_spec=pltpu.PrefetchScalarGridSpec(
            num_scalar_prefetch=0,
            grid=(N, n_co, n_p),
            in_specs=[
                pl.BlockSpec((None, Cin, bp), lambda n, co, p: (n, 0, p)),
                pl.BlockSpec((None, Cin, bp), lambda n, co, p: (n, 0, p + 1)),
                pl.BlockSpec((k * k, cb, Cin), lambda n, co, p: (0, co, 0)),
                pl.BlockSpec((1, pw_pad), lambda n, co, p: (0, 0)),
            ],
            out_specs=pl.BlockSpec((None, cb, pw_pad), lambda n, co, p: (n, co, 0)),
            scratch_shapes=[
                pltpu.VMEM((cb, bp), jnp.float32),   # conv tile accumulator
                pltpu.VMEM((cb, 1), jnp.float32),    # streaming masked sum
            ],
        ),
        compiler_params=pltpu.CompilerParams(
            dimension_semantics=("parallel", "parallel", "arbitrary"),
            vmem_limit_bytes=int(vmem_cap * 0.8),
        ),
    )(x_flat, x_flat, w_r, mask)

    # (N, Cout_pad, Pw_pad) -> (N, Cout, Ho, Wo): slice + reshape + subsample.
    out = out[:, :Cout, :Pw].astype(jnp.float32).reshape(N, Cout, Hw, Wp)
    return out[:, :, ::s, :(Wo - 1) * s + 1:s]


def _reference(x, weight, bias, *, kernel_size, stride, padding):
    """Pure-JAX fp32 reference of the same forward pass."""
    xp = jnp.pad(x, ((0, 0), (0, 0), (padding, padding), (padding, padding)),
                 mode="reflect")
    y = jax.lax.conv_general_dilated(
        xp, weight, window_strides=(stride, stride), padding="VALID",
        dimension_numbers=("NCHW", "OIHW", "NCHW"))
    y = y + bias.reshape(1, -1, 1, 1)
    mean = jnp.mean(y, axis=(2, 3), keepdims=True)
    var = jnp.mean((y - mean) ** 2, axis=(2, 3), keepdims=True)
    yn = (y - mean) / jnp.sqrt(var + EPS)
    return yn * jax.nn.sigmoid(yn)


if __name__ == "__main__":
    # Module config: Conv2dBlock(in=4, out=8, kernel_size=3, stride=1, padding=1,
    #                            sn=False, norm='IN', activ='SiLU')
    N, Cin, H, W = 2, 4, 16, 16
    Cout, ksize, stride, padding = 8, 3, 1, 1

    key = jax.random.PRNGKey(0)
    kx, kw, kb = jax.random.split(key, 3)
    x = jax.random.normal(kx, (N, Cin, H, W), dtype=jnp.float32)
    fan_in = Cin * ksize * ksize
    bound = 1.0 / (fan_in ** 0.5)
    weight = jax.random.uniform(kw, (Cout, Cin, ksize, ksize),
                                minval=-bound, maxval=bound, dtype=jnp.float32)
    bias = jax.random.uniform(kb, (Cout,), minval=-bound, maxval=bound,
                              dtype=jnp.float32)

    ref = _reference(x, weight, bias, kernel_size=ksize, stride=stride,
                     padding=padding)

    # Auto tiling (single spatial tile at this size).
    out = jax.block_until_ready(
        conv2d_block(x, weight, bias, kernel_size=ksize, stride=stride,
                     padding=padding))
    # Forced small spatial tile: exercises the multi-tile halo / streaming path.
    out_tiled = jax.block_until_ready(
        conv2d_block(x, weight, bias, kernel_size=ksize, stride=stride,
                     padding=padding, block_p=128))

    assert out.shape == (N, Cout, H, W)
    # bf16 MXU inputs + bf16 resident/output storage -> looser tolerance than fp32.
    assert jnp.max(jnp.abs(out - ref)) < 1e-1, "mismatch vs. reference (auto tile)"
    assert jnp.mean(jnp.abs(out - ref)) < 1e-2, "large mean error vs. reference"
    assert jnp.max(jnp.abs(out_tiled - ref)) < 1e-1, "mismatch vs. reference (P tiles)"
    assert jnp.max(jnp.abs(out - out_tiled)) < 5e-2, "tiling changed the result"

    print("KERNEL_OK")
</pallas_src>

<mosaic_0001>
module attributes {stable_mosaic.version = 11 : i64} {
  func.func @_conv_in_silu_kernel(%arg0: i32, %arg1: i32, %arg2: i32, %arg3: memref<1x4x384xbf16, #tpu.memory_space<vmem>>, %arg4: memref<1x4x384xbf16, #tpu.memory_space<vmem>>, %arg5: memref<9x8x4xbf16, #tpu.memory_space<vmem>>, %arg6: memref<1x384xf32, #tpu.memory_space<vmem>>, %arg7: memref<1x8x384xbf16, #tpu.memory_space<vmem>>, %arg8: memref<8x384xf32, #tpu.memory_space<vmem>>, %arg9: memref<8x1xf32, #tpu.memory_space<vmem>>) attributes {dimension_semantics = [#tpu.dimension_semantics<parallel>, #tpu.dimension_semantics<parallel>, #tpu.dimension_semantics<arbitrary>], iteration_bounds = array<i64: 2, 1, 1>, scalar_prefetch = 0 : i64, scratch_operands = 2 : i64, tpu.core_type = #tpu.core_type<tc>, window_params = [{transform_indices = @transform_0, window_bounds = array<i64: 1, 4, 384>}, {transform_indices = @transform_1, window_bounds = array<i64: 1, 4, 384>}, {transform_indices = @transform_2, window_bounds = array<i64: 9, 8, 4>}, {pipeline_mode = #tpu.pipeline_mode<synchronous>, transform_indices = @transform_3, window_bounds = array<i64: 1, 384>}, {transform_indices = @transform_4, window_bounds = array<i64: 1, 8, 384>}]} {
    %c0_i32 = arith.constant 0 : i32
    %0 = arith.cmpi eq, %arg2, %c0_i32 : i32
    %1 = arith.extui %0 : i1 to i32
    %c0_i32_0 = arith.constant 0 : i32
    %2 = arith.cmpi ne, %1, %c0_i32_0 : i32
    scf.if %2 {
      %cst_84 = arith.constant 0.000000e+00 : f32
      %93 = vector.broadcast %cst_84 : f32 to vector<8x1xf32>
      %c0_85 = arith.constant 0 : index
      %c0_86 = arith.constant 0 : index
      %94 = vector.load %arg9[%c0_85, %c0_86] : memref<8x1xf32, #tpu.memory_space<vmem>>, vector<8x1xf32>
      tpu.vector_store %arg9[%c0_85, %c0_86], %93 {strides = array<i32>} : memref<8x1xf32, #tpu.memory_space<vmem>>, vector<8x1xf32>,
    } else {
    }
    %c0 = arith.constant 0 : index
    %c0_1 = arith.constant 0 : index
    %c0_2 = arith.constant 0 : index
    %3 = vector.load %arg3[%c0, %c0_1, %c0_2] : memref<1x4x384xbf16, #tpu.memory_space<vmem>>, vector<1x4x384xbf16>
    %4 = vector.shape_cast %3 : vector<1x4x384xbf16> to vector<4x384xbf16>
    %c0_3 = arith.constant 0 : index
    %c0_4 = arith.constant 0 : index
    %c0_5 = arith.constant 0 : index
    %5 = vector.load %arg4[%c0_3, %c0_4, %c0_5] : memref<1x4x384xbf16, #tpu.memory_space<vmem>>, vector<1x4x384xbf16>
    %6 = vector.shape_cast %5 : vector<1x4x384xbf16> to vector<4x384xbf16>
    %7 = tpu.concatenate %4, %6 in 1 : vector<4x384xbf16>, vector<4x384xbf16> -> vector<4x768xbf16>
    %cst = arith.constant 0.000000e+00 : f32
    %8 = vector.broadcast %cst : f32 to vector<8x384xf32>
    %c0_6 = arith.constant 0 : index
    %c0_7 = arith.constant 0 : index
    %9 = vector.load %arg8[%c0_6, %c0_7] : memref<8x384xf32, #tpu.memory_space<vmem>>, vector<8x384xf32>
    tpu.vector_store %arg8[%c0_6, %c0_7], %8 {strides = array<i32>} : memref<8x384xf32, #tpu.memory_space<vmem>>, vector<8x384xf32>,
    %c0_8 = arith.constant 0 : index
    %c0_9 = arith.constant 0 : index
    %10 = vector.load %arg8[%c0_8, %c0_9] : memref<8x384xf32, #tpu.memory_space<vmem>>, vector<8x384xf32>
    %c0_10 = arith.constant 0 : index
    %c0_11 = arith.constant 0 : index
    %c0_12 = arith.constant 0 : index
    %11 = vector.load %arg5[%c0_10, %c0_11, %c0_12] : memref<9x8x4xbf16, #tpu.memory_space<vmem>>, vector<1x8x4xbf16>
    %12 = vector.shape_cast %11 : vector<1x8x4xbf16> to vector<8x4xbf16>
    %13 = vector.extract_strided_slice %7 {offsets = [0, 0], sizes = [4, 384], strides = [1, 1]} : vector<4x768xbf16> to vector<4x384xbf16>
    %cst_13 = arith.constant dense<0.000000e+00> : vector<8x384xf32>
    %14 = tpu.matmul %12, %13, %cst_13 {dimension_numbers = #tpu.dot_dimension_numbers<[1], [0], [0], [1], [0, 0, 1, 1], [], []>} : vector<8x4xbf16>, vector<4x384xbf16>, vector<8x384xf32> -> vector<8x384xf32>
    %15 = arith.addf %10, %14 : vector<8x384xf32>
    %c0_14 = arith.constant 0 : index
    %c0_15 = arith.constant 0 : index
    %16 = vector.load %arg8[%c0_14, %c0_15] : memref<8x384xf32, #tpu.memory_space<vmem>>, vector<8x384xf32>
    tpu.vector_store %arg8[%c0_14, %c0_15], %15 {strides = array<i32>} : memref<8x384xf32, #tpu.memory_space<vmem>>, vector<8x384xf32>,
    %c0_16 = arith.constant 0 : index
    %c0_17 = arith.constant 0 : index
    %17 = vector.load %arg8[%c0_16, %c0_17] : memref<8x384xf32, #tpu.memory_space<vmem>>, vector<8x384xf32>
    %c1 = arith.constant 1 : index
    %c0_18 = arith.constant 0 : index
    %c0_19 = arith.constant 0 : index
    %18 = vector.load %arg5[%c1, %c0_18, %c0_19] : memref<9x8x4xbf16, #tpu.memory_space<vmem>>, vector<1x8x4xbf16>
    %19 = vector.shape_cast %18 : vector<1x8x4xbf16> to vector<8x4xbf16>
    %20 = vector.extract_strided_slice %7 {offsets = [0, 1], sizes = [4, 384], strides = [1, 1]} : vector<4x768xbf16> to vector<4x384xbf16>
    %cst_20 = arith.constant dense<0.000000e+00> : vector<8x384xf32>
    %21 = tpu.matmul %19, %20, %cst_20 {dimension_numbers = #tpu.dot_dimension_numbers<[1], [0], [0], [1], [0, 0, 1, 1], [], []>} : vector<8x4xbf16>, vector<4x384xbf16>, vector<8x384xf32> -> vector<8x384xf32>
    %22 = arith.addf %17, %21 : vector<8x384xf32>
    %c0_21 = arith.constant 0 : index
    %c0_22 = arith.constant 0 : index
    %23 = vector.load %arg8[%c0_21, %c0_22] : memref<8x384xf32, #tpu.memory_space<vmem>>, vector<8x384xf32>
    tpu.vector_store %arg8[%c0_21, %c0_22], %22 {strides = array<i32>} : memref<8x384xf32, #tpu.memory_space<vmem>>, vector<8x384xf32>,
    %c0_23 = arith.constant 0 : index
    %c0_24 = arith.constant 0 : index
    %24 = vector.load %arg8[%c0_23, %c0_24] : memref<8x384xf32, #tpu.memory_space<vmem>>, vector<8x384xf32>
    %c2 = arith.constant 2 : index
    %c0_25 = arith.constant 0 : index
    %c0_26 = arith.constant 0 : index
    %25 = vector.load %arg5[%c2, %c0_25, %c0_26] : memref<9x8x4xbf16, #tpu.memory_space<vmem>>, vector<1x8x4xbf16>
    %26 = vector.shape_cast %25 : vector<1x8x4xbf16> to vector<8x4xbf16>
    %27 = vector.extract_strided_slice %7 {offsets = [0, 2], sizes = [4, 384], strides = [1, 1]} : vector<4x768xbf16> to vector<4x384xbf16>
    %cst_27 = arith.constant dense<0.000000e+00> : vector<8x384xf32>
    %28 = tpu.matmul %26, %27, %cst_27 {dimension_numbers = #tpu.dot_dimension_numbers<[1], [0], [0], [1], [0, 0, 1, 1], [], []>} : vector<8x4xbf16>, vector<4x384xbf16>, vector<8x384xf32> -> vector<8x384xf32>
    %29 = arith.addf %24, %28 : vector<8x384xf32>
    %c0_28 = arith.constant 0 : index
    %c0_29 = arith.constant 0 : index
    %30 = vector.load %arg8[%c0_28, %c0_29] : memref<8x384xf32, #tpu.memory_space<vmem>>, vector<8x384xf32>
    tpu.vector_store %arg8[%c0_28, %c0_29], %29 {strides = array<i32>} : memref<8x384xf32, #tpu.memory_space<vmem>>, vector<8x384xf32>,
    %c0_30 = arith.constant 0 : index
    %c0_31 = arith.constant 0 : index
    %31 = vector.load %arg8[%c0_30, %c0_31] : memref<8x384xf32, #tpu.memory_space<vmem>>, vector<8x384xf32>
    %c3 = arith.constant 3 : index
    %c0_32 = arith.constant 0 : index
    %c0_33 = arith.constant 0 : index
    %32 = vector.load %arg5[%c3, %c0_32, %c0_33] : memref<9x8x4xbf16, #tpu.memory_space<vmem>>, vector<1x8x4xbf16>
    %33 = vector.shape_cast %32 : vector<1x8x4xbf16> to vector<8x4xbf16>
    %34 = vector.extract_strided_slice %7 {offsets = [0, 18], sizes = [4, 384], strides = [1, 1]} : vector<4x768xbf16> to vector<4x384xbf16>
    %cst_34 = arith.constant dense<0.000000e+00> : vector<8x384xf32>
    %35 = tpu.matmul %33, %34, %cst_34 {dimension_numbers = #tpu.dot_dimension_numbers<[1], [0], [0], [1], [0, 0, 1, 1], [], []>} : vector<8x4xbf16>, vector<4x384xbf16>, vector<8x384xf32> -> vector<8x384xf32>
    %36 = arith.addf %31, %35 : vector<8x384xf32>
    %c0_35 = arith.constant 0 : index
    %c0_36 = arith.constant 0 : index
    %37 = vector.load %arg8[%c0_35, %c0_36] : memref<8x384xf32, #tpu.memory_space<vmem>>, vector<8x384xf32>
    tpu.vector_store %arg8[%c0_35, %c0_36], %36 {strides = array<i32>} : memref<8x384xf32, #tpu.memory_space<vmem>>, vector<8x384xf32>,
    %c0_37 = arith.constant 0 : index
    %c0_38 = arith.constant 0 : index
    %38 = vector.load %arg8[%c0_37, %c0_38] : memref<8x384xf32, #tpu.memory_space<vmem>>, vector<8x384xf32>
    %c4 = arith.constant 4 : index
    %c0_39 = arith.constant 0 : index
    %c0_40 = arith.constant 0 : index
    %39 = vector.load %arg5[%c4, %c0_39, %c0_40] : memref<9x8x4xbf16, #tpu.memory_space<vmem>>, vector<1x8x4xbf16>
    %40 = vector.shape_cast %39 : vector<1x8x4xbf16> to vector<8x4xbf16>
    %41 = vector.extract_strided_slice %7 {offsets = [0, 19], sizes = [4, 384], strides = [1, 1]} : vector<4x768xbf16> to vector<4x384xbf16>
    %cst_41 = arith.constant dense<0.000000e+00> : vector<8x384xf32>
    %42 = tpu.matmul %40, %41, %cst_41 {dimension_numbers = #tpu.dot_dimension_numbers<[1], [0], [0], [1], [0, 0, 1, 1], [], []>} : vector<8x4xbf16>, vector<4x384xbf16>, vector<8x384xf32> -> vector<8x384xf32>
    %43 = arith.addf %38, %42 : vector<8x384xf32>
    %c0_42 = arith.constant 0 : index
    %c0_43 = arith.constant 0 : index
    %44 = vector.load %arg8[%c0_42, %c0_43] : memref<8x384xf32, #tpu.memory_space<vmem>>, vector<8x384xf32>
    tpu.vector_store %arg8[%c0_42, %c0_43], %43 {strides = array<i32>} : memref<8x384xf32, #tpu.memory_space<vmem>>, vector<8x384xf32>,
    %c0_44 = arith.constant 0 : index
    %c0_45 = arith.constant 0 : index
    %45 = vector.load %arg8[%c0_44, %c0_45] : memref<8x384xf32, #tpu.memory_space<vmem>>, vector<8x384xf32>
    %c5 = arith.constant 5 : index
    %c0_46 = arith.constant 0 : index
    %c0_47 = arith.constant 0 : index
    %46 = vector.load %arg5[%c5, %c0_46, %c0_47] : memref<9x8x4xbf16, #tpu.memory_space<vmem>>, vector<1x8x4xbf16>
    %47 = vector.shape_cast %46 : vector<1x8x4xbf16> to vector<8x4xbf16>
    %48 = vector.extract_strided_slice %7 {offsets = [0, 20], sizes = [4, 384], strides = [1, 1]} : vector<4x768xbf16> to vector<4x384xbf16>
    %cst_48 = arith.constant dense<0.000000e+00> : vector<8x384xf32>
    %49 = tpu.matmul %47, %48, %cst_48 {dimension_numbers = #tpu.dot_dimension_numbers<[1], [0], [0], [1], [0, 0, 1, 1], [], []>} : vector<8x4xbf16>, vector<4x384xbf16>, vector<8x384xf32> -> vector<8x384xf32>
    %50 = arith.addf %45, %49 : vector<8x384xf32>
    %c0_49 = arith.constant 0 : index
    %c0_50 = arith.constant 0 : index
    %51 = vector.load %arg8[%c0_49, %c0_50] : memref<8x384xf32, #tpu.memory_space<vmem>>, vector<8x384xf32>
    tpu.vector_store %arg8[%c0_49, %c0_50], %50 {strides = array<i32>} : memref<8x384xf32, #tpu.memory_space<vmem>>, vector<8x384xf32>,
    %c0_51 = arith.constant 0 : index
    %c0_52 = arith.constant 0 : index
    %52 = vector.load %arg8[%c0_51, %c0_52] : memref<8x384xf32, #tpu.memory_space<vmem>>, vector<8x384xf32>
    %c6 = arith.constant 6 : index
    %c0_53 = arith.constant 0 : index
    %c0_54 = arith.constant 0 : index
    %53 = vector.load %arg5[%c6, %c0_53, %c0_54] : memref<9x8x4xbf16, #tpu.memory_space<vmem>>, vector<1x8x4xbf16>
    %54 = vector.shape_cast %53 : vector<1x8x4xbf16> to vector<8x4xbf16>
    %55 = vector.extract_strided_slice %7 {offsets = [0, 36], sizes = [4, 384], strides = [1, 1]} : vector<4x768xbf16> to vector<4x384xbf16>
    %cst_55 = arith.constant dense<0.000000e+00> : vector<8x384xf32>
    %56 = tpu.matmul %54, %55, %cst_55 {dimension_numbers = #tpu.dot_dimension_numbers<[1], [0], [0], [1], [0, 0, 1, 1], [], []>} : vector<8x4xbf16>, vector<4x384xbf16>, vector<8x384xf32> -> vector<8x384xf32>
    %57 = arith.addf %52, %56 : vector<8x384xf32>
    %c0_56 = arith.constant 0 : index
    %c0_57 = arith.constant 0 : index
    %58 = vector.load %arg8[%c0_56, %c0_57] : memref<8x384xf32, #tpu.memory_space<vmem>>, vector<8x384xf32>
    tpu.vector_store %arg8[%c0_56, %c0_57], %57 {strides = array<i32>} : memref<8x384xf32, #tpu.memory_space<vmem>>, vector<8x384xf32>,
    %c0_58 = arith.constant 0 : index
    %c0_59 = arith.constant 0 : index
    %59 = vector.load %arg8[%c0_58, %c0_59] : memref<8x384xf32, #tpu.memory_space<vmem>>, vector<8x384xf32>
    %c7 = arith.constant 7 : index
    %c0_60 = arith.constant 0 : index
    %c0_61 = arith.constant 0 : index
    %60 = vector.load %arg5[%c7, %c0_60, %c0_61] : memref<9x8x4xbf16, #tpu.memory_space<vmem>>, vector<1x8x4xbf16>
    %61 = vector.shape_cast %60 : vector<1x8x4xbf16> to vector<8x4xbf16>
    %62 = vector.extract_strided_slice %7 {offsets = [0, 37], sizes = [4, 384], strides = [1, 1]} : vector<4x768xbf16> to vector<4x384xbf16>
    %cst_62 = arith.constant dense<0.000000e+00> : vector<8x384xf32>
    %63 = tpu.matmul %61, %62, %cst_62 {dimension_numbers = #tpu.dot_dimension_numbers<[1], [0], [0], [1], [0, 0, 1, 1], [], []>} : vector<8x4xbf16>, vector<4x384xbf16>, vector<8x384xf32> -> vector<8x384xf32>
    %64 = arith.addf %59, %63 : vector<8x384xf32>
    %c0_63 = arith.constant 0 : index
    %c0_64 = arith.constant 0 : index
    %65 = vector.load %arg8[%c0_63, %c0_64] : memref<8x384xf32, #tpu.memory_space<vmem>>, vector<8x384xf32>
    tpu.vector_store %arg8[%c0_63, %c0_64], %64 {strides = array<i32>} : memref<8x384xf32, #tpu.memory_space<vmem>>, vector<8x384xf32>,
    %c0_65 = arith.constant 0 : index
    %c0_66 = arith.constant 0 : index
    %66 = vector.load %arg8[%c0_65, %c0_66] : memref<8x384xf32, #tpu.memory_space<vmem>>, vector<8x384xf32>
    %c8 = arith.constant 8 : index
    %c0_67 = arith.constant 0 : index
    %c0_68 = arith.constant 0 : index
    %67 = vector.load %arg5[%c8, %c0_67, %c0_68] : memref<9x8x4xbf16, #tpu.memory_space<vmem>>, vector<1x8x4xbf16>
    %68 = vector.shape_cast %67 : vector<1x8x4xbf16> to vector<8x4xbf16>
    %69 = vector.extract_strided_slice %7 {offsets = [0, 38], sizes = [4, 384], strides = [1, 1]} : vector<4x768xbf16> to vector<4x384xbf16>
    %cst_69 = arith.constant dense<0.000000e+00> : vector<8x384xf32>
    %70 = tpu.matmul %68, %69, %cst_69 {dimension_numbers = #tpu.dot_dimension_numbers<[1], [0], [0], [1], [0, 0, 1, 1], [], []>} : vector<8x4xbf16>, vector<4x384xbf16>, vector<8x384xf32> -> vector<8x384xf32>
    %71 = arith.addf %66, %70 : vector<8x384xf32>
    %c0_70 = arith.constant 0 : index
    %c0_71 = arith.constant 0 : index
    %72 = vector.load %arg8[%c0_70, %c0_71] : memref<8x384xf32, #tpu.memory_space<vmem>>, vector<8x384xf32>
    tpu.vector_store %arg8[%c0_70, %c0_71], %71 {strides = array<i32>} : memref<8x384xf32, #tpu.memory_space<vmem>>, vector<8x384xf32>,
    %c384_i32 = arith.constant 384 : i32
    %73 = arith.muli %arg2, %c384_i32 : i32
    %74 = tpu.assume_multiple %73, 384 : i32
    %c0_72 = arith.constant 0 : index
    %c0_73 = arith.constant 0 : index
    %75 = vector.load %arg8[%c0_72, %c0_73] : memref<8x384xf32, #tpu.memory_space<vmem>>, vector<8x384xf32>
    %c0_74 = arith.constant 0 : index
    %76 = arith.index_cast %74 : i32 to index
    %77 = vector.load %arg6[%c0_74, %76] : memref<1x384xf32, #tpu.memory_space<vmem>>, vector<1x384xf32>
    %c0_75 = arith.constant 0 : index
    %c0_76 = arith.constant 0 : index
    %78 = vector.load %arg9[%c0_75, %c0_76] : memref<8x1xf32, #tpu.memory_space<vmem>>, vector<8x1xf32>
    %79 = vector.broadcast %77 : vector<1x384xf32> to vector<8x384xf32>
    %80 = arith.mulf %75, %79 : vector<8x384xf32>
    %cst_77 = arith.constant dense<0.000000e+00> : vector<8xf32>
    %81 = vector.multi_reduction <add>, %80, %cst_77 [1] : vector<8x384xf32> to vector<8xf32>
    %82 = vector.shape_cast %81 : vector<8xf32> to vector<8x1xf32>
    %83 = arith.addf %78, %82 : vector<8x1xf32>
    %c0_78 = arith.constant 0 : index
    %c0_79 = arith.constant 0 : index
    %84 = vector.load %arg9[%c0_78, %c0_79] : memref<8x1xf32, #tpu.memory_space<vmem>>, vector<8x1xf32>
    tpu.vector_store %arg9[%c0_78, %c0_79], %83 {strides = array<i32>} : memref<8x1xf32, #tpu.memory_space<vmem>>, vector<8x1xf32>,
    %85 = arith.truncf %75 : vector<8x384xf32> to vector<8x384xbf16>
    %c0_80 = arith.constant 0 : index
    %c0_81 = arith.constant 0 : index
    %86 = arith.index_cast %74 : i32 to index
    %87 = vector.load %arg7[%c0_80, %c0_81, %86] : memref<1x8x384xbf16, #tpu.memory_space<vmem>>, vector<1x8x384xbf16>
    %88 = vector.shape_cast %87 : vector<1x8x384xbf16> to vector<8x384xbf16>
    %89 = vector.shape_cast %85 : vector<8x384xbf16> to vector<1x8x384xbf16>
    tpu.vector_store %arg7[%c0_80, %c0_81, %86], %89 {strides = array<i32>} : memref<1x8x384xbf16, #tpu.memory_space<vmem>>, vector<1x8x384xbf16>,
    %c0_i32_82 = arith.constant 0 : i32
    %90 = arith.cmpi eq, %arg2, %c0_i32_82 : i32
    %91 = arith.extui %90 : i1 to i32
    %c0_i32_83 = arith.constant 0 : i32
    %92 = arith.cmpi ne, %91, %c0_i32_83 : i32
    scf.if %92 {
      %c0_84 = arith.constant 0 : index
      %c0_85 = arith.constant 0 : index
      %93 = vector.load %arg9[%c0_84, %c0_85] : memref<8x1xf32, #tpu.memory_space<vmem>>, vector<8x1xf32>
      %cst_86 = arith.constant 3.906250e-03 : f32
      %94 = vector.broadcast %cst_86 : f32 to vector<8x1xf32>
      %95 = arith.mulf %93, %94 : vector<8x1xf32>
      %cst_87 = arith.constant 0.000000e+00 : f32
      %96 = vector.broadcast %cst_87 : f32 to vector<8x1xf32>
      %c0_88 = arith.constant 0 : index
      %c0_89 = arith.constant 0 : index
      %c0_90 = arith.constant 0 : index
      %97 = vector.load %arg7[%c0_88, %c0_89, %c0_90] : memref<1x8x384xbf16, #tpu.memory_space<vmem>>, vector<1x8x384xbf16>
      %98 = vector.shape_cast %97 : vector<1x8x384xbf16> to vector<8x384xbf16>
      %99 = arith.extf %98 : vector<8x384xbf16> to vector<8x384xf32>
      %100 = vector.broadcast %95 : vector<8x1xf32> to vector<8x384xf32>
      %101 = arith.subf %99, %100 : vector<8x384xf32>
      %c0_91 = arith.constant 0 : index
      %c0_92 = arith.constant 0 : index
      %102 = vector.load %arg6[%c0_91, %c0_92] : memref<1x384xf32, #tpu.memory_space<vmem>>, vector<1x384xf32>
      %103 = vector.broadcast %102 : vector<1x384xf32> to vector<8x384xf32>
      %104 = arith.mulf %101, %103 : vector<8x384xf32>
      %105 = arith.mulf %104, %104 : vector<8x384xf32>
      %cst_93 = arith.constant dense<0.000000e+00> : vector<8xf32>
      %106 = vector.multi_reduction <add>, %105, %cst_93 [1] : vector<8x384xf32> to vector<8xf32>
      %107 = vector.shape_cast %106 : vector<8xf32> to vector<8x1xf32>
      %108 = arith.addf %96, %107 : vector<8x1xf32>
      %cst_94 = arith.constant 3.906250e-03 : f32
      %109 = vector.broadcast %cst_94 : f32 to vector<8x1xf32>
      %110 = arith.mulf %108, %109 : vector<8x1xf32>
      %cst_95 = arith.constant 9.99999974E-6 : f32
      %111 = vector.broadcast %cst_95 : f32 to vector<8x1xf32>
      %112 = arith.addf %110, %111 : vector<8x1xf32>
      %113 = math.rsqrt %112 : vector<8x1xf32>
      %c0_96 = arith.constant 0 : index
      %c0_97 = arith.constant 0 : index
      %c0_98 = arith.constant 0 : index
      %114 = vector.load %arg7[%c0_96, %c0_97, %c0_98] : memref<1x8x384xbf16, #tpu.memory_space<vmem>>, vector<1x8x384xbf16>
      %115 = vector.shape_cast %114 : vector<1x8x384xbf16> to vector<8x384xbf16>
      %116 = arith.extf %115 : vector<8x384xbf16> to vector<8x384xf32>
      %117 = vector.broadcast %95 : vector<8x1xf32> to vector<8x384xf32>
      %118 = arith.subf %116, %117 : vector<8x384xf32>
      %119 = vector.broadcast %113 : vector<8x1xf32> to vector<8x384xf32>
      %120 = arith.mulf %118, %119 : vector<8x384xf32>
      %121 = arith.negf %120 : vector<8x384xf32>
      %122 = math.exp %121 : vector<8x384xf32>
      %cst_99 = arith.constant 1.000000e+00 : f32
      %123 = vector.broadcast %cst_99 : f32 to vector<8x384xf32>
      %124 = arith.addf %123, %122 : vector<8x384xf32>
      %125 = arith.divf %123, %124 : vector<8x384xf32>
      %126 = arith.mulf %120, %125 : vector<8x384xf32>
      %127 = arith.truncf %126 : vector<8x384xf32> to vector<8x384xbf16>
      %c0_100 = arith.constant 0 : index
      %c0_101 = arith.constant 0 : index
      %c0_102 = arith.constant 0 : index
      %128 = vector.load %arg7[%c0_100, %c0_101, %c0_102] : memref<1x8x384xbf16, #tpu.memory_space<vmem>>, vector<1x8x384xbf16>
      %129 = vector.shape_cast %128 : vector<1x8x384xbf16> to vector<8x384xbf16>
      %130 = vector.shape_cast %127 : vector<8x384xbf16> to vector<1x8x384xbf16>
      tpu.vector_store %arg7[%c0_100, %c0_101, %c0_102], %130 {strides = array<i32>} : memref<1x8x384xbf16, #tpu.memory_space<vmem>>, vector<1x8x384xbf16>,
    } else {
    }
    return
  }
  func.func @transform_0(%arg0: i32, %arg1: i32, %arg2: i32) -> (i32, i32, i32) {
    %c0_i32 = arith.constant 0 : i32
    %c0_i32_0 = arith.constant 0 : i32
    return %arg0, %c0_i32, %arg2 : i32, i32, i32
  }
  func.func @transform_1(%arg0: i32, %arg1: i32, %arg2: i32) -> (i32, i32, i32) {
    %c1_i32 = arith.constant 1 : i32
    %0 = arith.addi %arg2, %c1_i32 : i32
    %c0_i32 = arith.constant 0 : i32
    %c0_i32_0 = arith.constant 0 : i32
    return %arg0, %c0_i32, %0 : i32, i32, i32
  }
  func.func @transform_2(%arg0: i32, %arg1: i32, %arg2: i32) -> (i32, i32, i32) {
    %c0_i32 = arith.constant 0 : i32
    %c0_i32_0 = arith.constant 0 : i32
    %c0_i32_1 = arith.constant 0 : i32
    return %c0_i32, %arg1, %c0_i32_0 : i32, i32, i32
  }
  func.func @transform_3(%arg0: i32, %arg1: i32, %arg2: i32) -> (i32, i32) {
    %c0_i32 = arith.constant 0 : i32
    %c0_i32_0 = arith.constant 0 : i32
    %c0_i32_1 = arith.constant 0 : i32
    return %c0_i32, %c0_i32_0 : i32, i32
  }
  func.func @transform_4(%arg0: i32, %arg1: i32, %arg2: i32) -> (i32, i32, i32) {
    %c0_i32 = arith.constant 0 : i32
    %c0_i32_0 = arith.constant 0 : i32
    return %arg0, %arg1, %c0_i32 : i32, i32, i32
  }
}

</mosaic_0001>

<llo_original>
// kernel: conv2d_block.1
$region0: #{conv2d_block.1}
  #allocation0 [shape = 'u32[]', space=smem, size = 0x4, offset = 0x4, fixed_abs, tag = 'smem constant byte address 0x4 - core index']
  #allocation1 [shape = 'u32[144,128]{1,0:T(1,128)}', space=vmem, size = 0x12000, scoped, tag = 'internal scratch']
  #allocation2 [shape = 'f32[8,384]{1,0:T(8,128)}', space=vmem, size = 0x3000, scoped, tag = 'scratch operand']
  #allocation3 [shape = 'f32[8,1]{1,0:T(8,128)}', space=vmem, size = 0x1000, scoped, tag = 'scratch operand']
  %s0 = inlined_call_operand.vmem [shape: bf16[2,4,768], index: 0, kind: input, shape index: {}, may-alias: {0,1}]
  %s1 = inlined_call_operand.vmem [shape: bf16[2,4,768], index: 1, kind: input, shape index: {}, may-alias: {0,1}]
  %s2 = inlined_call_operand.vmem [shape: bf16[9,8,4], index: 2, kind: input, shape index: {}]
  %s3 = inlined_call_operand.vmem [shape: f32[1,384], index: 3, kind: input, shape index: {}]
  %s4 = inlined_call_operand.vmem [shape: bf16[2,8,384], index: 4, kind: output, shape index: {}]
  %s5 = sld [smem:[#allocation0]]
  $region57: #{conv2d_block.1} parent=0
    _
  %s7 = ssub.s32 1, %s5
  %s8 = scalar_select 0, %s7, %s5
  loop: start=0, step=1, limit=4
  $region2: #{conv2d_block.1} parent=0 // loop_pre_header
    _
  $region3: #{conv2d_block.1} parent=0 // loop_header
    %s10 = sphi 0, %s14
    %p11 = scmp.ge.s32.totalorder %s10, 4
    %s17 = sphi 0, %s36
    %s18 = sphi 0, %s32
    %s19 = sphi 0, %s28
    %s20 = sphi 0, %s17
    %s21 = sphi 0, %s18
    %s22 = sphi 0, %s19
    %s23 = sphi 0, %s20
    %s24 = sphi 0, %s21
    %s25 = sphi 0, %s22
    %s41 = sphi 0, %s43
    %s44 = sphi 0, %s41
    %s45 = sphi 0, %s44
    %s61 = sphi 0, %s45
    %s71 = sphi 0, %s73
    %s74 = sphi 0, %s71
    %s75 = sphi 0, %s74
    %s91 = sphi 0, %s75
    %s97 = sphi 0, %s99
    %s100 = sphi 0, %s97
    %s101 = sphi 0, %s100
    %s117 = sphi 0, %s101
    %s121 = sphi 0, %s121
    %s123 = sphi 0, %s121
    %s124 = sphi 0, %s123
    %s138 = sphi 0, %s124
    %s146 = sphi 0, %s148
    %s149 = sphi 0, %s146
    %s150 = sphi 0, %s149
    %s166 = sphi 0, %s150
  $region4: #{conv2d_block.1} parent=0 // loop_header_branch
    %13 = sbr.rel (%p11) target = $region8
  $region5: #{conv2d_block.1} parent=0 // loop_body
    %s15 = ssub.s32 %s10, 1
    %s16 = ssub.s32 %s10, 2
    %s26 = sadd.s32 1, %s19
    %p27 = scmp.ge.s32.totalorder %s26, 1
    %s28 = scalar_select %p27, 0, %s26
    %s29 = sadd.s32 1, %s18
    %s30 = scalar_select %p27, %s29, %s18
    %p31 = scmp.ge.s32.totalorder %s30, 1
    %s32 = scalar_select %p31, 0, %s30
    %s33 = sadd.s32 1, %s17
    %s34 = scalar_select %p31, %s33, %s17
    %p35 = scmp.ge.s32.totalorder %s34, 2
    %s36 = scalar_select %p35, 0, %s34
    %s37 = ssub.s32 %s17, %s36
    %s38 = ssub.s32 %s19, %s28
    %s39 = sor.u32 %s37, %s38
    %p40 = scmp.eq.s32.totalorder %s39, 0
    %s42 = sadd.s32 %s41, 1
    %s43 = scalar_select %p40, %s41, %s42
    %p46 = pneg %p40
    %p47 = scmp.eq.s32.totalorder %s10, 1
    %p48 = por %p46, %p47
    %p49 = scmp.ne.s32.totalorder %s41, %s44
    %p50 = scmp.eq.s32.totalorder %s10, 0
    %p51 = por %p49, %p50
    %p52 = scmp.ne.s32.totalorder %s41, %s44
    %p53 = scmp.eq.s32.totalorder %s15, 1
    %p54 = por %p52, %p53
    %p55 = scmp.ne.s32.totalorder %s44, %s45
    %p56 = scmp.eq.s32.totalorder %s15, 0
    %p57 = por %p55, %p56
    %p58 = scmp.ne.s32.totalorder %s44, %s45
    %p59 = scmp.eq.s32.totalorder %s16, 1
    %p60 = por %p58, %p59
    %p62 = scmp.ne.s32.totalorder %s45, %s61
    %p63 = scmp.eq.s32.totalorder %s16, 0
    %p64 = por %p62, %p63
    %s65 = sadd.s32 %s19, 1
    %s66 = sadd.s32 %s28, 1
    %s67 = ssub.s32 %s17, %s36
    %s68 = ssub.s32 %s65, %s66
    %s69 = sor.u32 %s67, %s68
    %p70 = scmp.eq.s32.totalorder %s69, 0
    %s72 = sadd.s32 %s71, 1
    %s73 = scalar_select %p70, %s71, %s72
    %p76 = pneg %p70
    %p77 = scmp.eq.s32.totalorder %s10, 1
    %p78 = por %p76, %p77
    %p79 = scmp.ne.s32.totalorder %s71, %s74
    %p80 = scmp.eq.s32.totalorder %s10, 0
    %p81 = por %p79, %p80
    %p82 = scmp.ne.s32.totalorder %s71, %s74
    %p83 = scmp.eq.s32.totalorder %s15, 1
    %p84 = por %p82, %p83
    %p85 = scmp.ne.s32.totalorder %s74, %s75
    %p86 = scmp.eq.s32.totalorder %s15, 0
    %p87 = por %p85, %p86
    %p88 = scmp.ne.s32.totalorder %s74, %s75
    %p89 = scmp.eq.s32.totalorder %s16, 1
    %p90 = por %p88, %p89
    %p92 = scmp.ne.s32.totalorder %s75, %s91
    %p93 = scmp.eq.s32.totalorder %s16, 0
    %p94 = por %p92, %p93
    %s95 = ssub.s32 %s18, %s32
    %p96 = scmp.eq.s32.totalorder %s95, 0
    %s98 = sadd.s32 %s97, 1
    %s99 = scalar_select %p96, %s97, %s98
    %p102 = pneg %p96
    %p103 = scmp.eq.s32.totalorder %s10, 1
    %p104 = por %p102, %p103
    %p105 = scmp.ne.s32.totalorder %s97, %s100
    %p106 = scmp.eq.s32.totalorder %s10, 0
    %p107 = por %p105, %p106
    %p108 = scmp.ne.s32.totalorder %s97, %s100
    %p109 = scmp.eq.s32.totalorder %s15, 1
    %p110 = por %p108, %p109
    %p111 = scmp.ne.s32.totalorder %s100, %s101
    %p112 = scmp.eq.s32.totalorder %s15, 0
    %p113 = por %p111, %p112
    %p114 = scmp.ne.s32.totalorder %s100, %s101
    %p115 = scmp.eq.s32.totalorder %s16, 1
    %p116 = por %p114, %p115
    %p118 = scmp.ne.s32.totalorder %s101, %s117
    %p119 = scmp.eq.s32.totalorder %s16, 0
    %p120 = por %p118, %p119
    %s122 = sadd.s32 %s121, 1
    %p125 = scmp.eq.s32.totalorder %s10, 1
    %p126 = scmp.ne.s32.totalorder %s121, %s123
    %p127 = scmp.eq.s32.totalorder %s10, 0
    %p128 = por %p126, %p127
    %p129 = scmp.ne.s32.totalorder %s121, %s123
    %p130 = scmp.eq.s32.totalorder %s15, 1
    %p131 = por %p129, %p130
    %p132 = scmp.ne.s32.totalorder %s123, %s124
    %p133 = scmp.eq.s32.totalorder %s15, 0
    %p134 = por %p132, %p133
    %p135 = scmp.ne.s32.totalorder %s123, %s124
    %p136 = scmp.eq.s32.totalorder %s16, 1
    %p137 = por %p135, %p136
    %p139 = scmp.ne.s32.totalorder %s124, %s138
    %p140 = scmp.eq.s32.totalorder %s16, 0
    %p141 = por %p139, %p140
    %s142 = ssub.s32 %s17, %s36
    %s143 = ssub.s32 %s18, %s32
    %s144 = sor.u32 %s142, %s143
    %p145 = scmp.eq.s32.totalorder %s144, 0
    %s147 = sadd.s32 %s146, 1
    %s148 = scalar_select %p145, %s146, %s147
    %p151 = pneg %p145
    %p152 = scmp.eq.s32.totalorder %s10, 1
    %p153 = por %p151, %p152
    %p154 = scmp.ne.s32.totalorder %s146, %s149
    %p155 = scmp.eq.s32.totalorder %s10, 0
    %p156 = por %p154, %p155
    %p157 = scmp.ne.s32.totalorder %s146, %s149
    %p158 = scmp.eq.s32.totalorder %s15, 1
    %p159 = por %p157, %p158
    %p160 = scmp.ne.s32.totalorder %s149, %s150
    %p161 = scmp.eq.s32.totalorder %s15, 0
    %p162 = por %p160, %p161
    %p163 = scmp.ne.s32.totalorder %s149, %s150
    %p164 = scmp.eq.s32.totalorder %s16, 1
    %p165 = por %p163, %p164
    %p167 = scmp.ne.s32.totalorder %s150, %s166
    %p168 = scmp.eq.s32.totalorder %s16, 0
    %p169 = por %p167, %p168
    %p170 = scmp.le.s32.totalorder 1, %s10
    %p171 = scmp.lt.s32.totalorder %s10, 3
    %p172 = pnand %p170, %p171
    %p173 = pneg %p172
    // Predicated region
    $region9: #{conv2d_block.1} parent=5 // pred_check
      _
    $region10: #{conv2d_block.1} parent=5 // pred_check_branch
      %175 = sbr.rel (%p172) target = $region12
    $region11: #{conv2d_block.1} parent=5 // pred_region
      %s176 = ssub.s32 %s10, 1
      // Predicated region
      $region13: #{conv2d_block.1} parent=11 // pred_check
        %p177 = pneg %p113
      $region14: #{conv2d_block.1} parent=11 // pred_check_branch
        %179 = sbr.rel (%p177) target = $region16
      $region15: #{conv2d_block.1} parent=11 // pred_region
        %p180 = scmp.lt.s32.totalorder %s21, 0
        %s181 = scalar_select %p180, %s21, 0
        %s182 = smul.addr %s181, 4
        %s183 = scalar_lea.vmem %s2, %s182
      $region16: #{conv2d_block.1} parent=11 // pred_fallthru
        _
      // Predicated region
      $region17: #{conv2d_block.1} parent=11 // pred_check
        %p184 = pneg %p134
      $region18: #{conv2d_block.1} parent=11 // pred_check_branch
        %186 = sbr.rel (%p184) target = $region20
      $region19: #{conv2d_block.1} parent=11 // pred_region
        _
      $region20: #{conv2d_block.1} parent=11 // pred_fallthru
        _
    $region12: #{conv2d_block.1} parent=5 // pred_fallthru
      _
    %p187 = scmp.lt.s32.totalorder %s10, 2
    // Predicated region
    $region21: #{conv2d_block.1} parent=5 // pred_check
      %p188 = pneg %p187
    $region22: #{conv2d_block.1} parent=5 // pred_check_branch
      %190 = sbr.rel (%p188) target = $region24
    $region23: #{conv2d_block.1} parent=5 // pred_region
      // Predicated region
      $region25: #{conv2d_block.1} parent=23 // pred_check
        %p191 = pneg %p51
      $region26: #{conv2d_block.1} parent=23 // pred_check_branch
        %193 = sbr.rel (%p191) target = $region28
      $region27: #{conv2d_block.1} parent=23 // pred_region
        %s194 = smul.u32 3, %s19
        %p195 = scmp.lt.s32.totalorder %s17, 1
        %s196 = scalar_select %p195, %s17, 1
        %p197 = scmp.lt.s32.totalorder %s194, 5
        %s198 = scalar_select %p197, %s194, 5
        %s199 = smul.addr %s196, 6
        %s200 = sadd.s32 %s198, %s199
        %s201 = smul.addr %s200, 2
        %s202 = scalar_lea.vmem %s0, %s201
        %s203 = smul.u32 3, %s19
      $region28: #{conv2d_block.1} parent=23 // pred_fallthru
        _
      // Predicated region
      $region29: #{conv2d_block.1} parent=23 // pred_check
        %p204 = pneg %p81
      $region30: #{conv2d_block.1} parent=23 // pred_check_branch
        %206 = sbr.rel (%p204) target = $region32
      $region31: #{conv2d_block.1} parent=23 // pred_region
        %s207 = sadd.s32 %s19, 1
        %s208 = smul.u32 3, %s207
        %p209 = scmp.lt.s32.totalorder %s17, 1
        %s210 = scalar_select %p209, %s17, 1
        %p211 = scmp.lt.s32.totalorder %s208, 5
        %s212 = scalar_select %p211, %s208, 5
        %s213 = smul.addr %s210, 6
        %s214 = sadd.s32 %s212, %s213
        %s215 = smul.addr %s214, 2
        %s216 = scalar_lea.vmem %s1, %s215
        %s217 = sadd.s32 %s19, 1
        %s218 = smul.u32 3, %s217
      $region32: #{conv2d_block.1} parent=23 // pred_fallthru
        _
    $region24: #{conv2d_block.1} parent=5 // pred_fallthru
      _
    %p219 = scmp.le.s32.totalorder 1, %s10
    %p220 = scmp.lt.s32.totalorder %s10, 3
    %p221 = pnand %p219, %p220
    %p222 = pneg %p221
    // Predicated region
    $region33: #{conv2d_block.1} parent=5 // pred_check
      _
    $region34: #{conv2d_block.1} parent=5 // pred_check_branch
      %224 = sbr.rel (%p221) target = $region36
    $region35: #{conv2d_block.1} parent=5 // pred_region
      %s225 = ssub.s32 %s10, 1
      %s226 = smul.u32 3, %s22
      %p227 = scmp.lt.s32.totalorder %s20, 1
      %s228 = scalar_select %p227, %s20, 1
      %p229 = scmp.lt.s32.totalorder %s226, 5
      %s230 = scalar_select %p229, %s226, 5
      %s231 = smul.addr %s228, 6
      %s232 = sadd.s32 %s230, %s231
      %s233 = smul.addr %s232, 2
      %s234 = scalar_lea.vmem %s0, %s233
      %p235 = pneg %p57
      %p236 = pneg %p54
      %s237 = sadd.s32 %s22, 1
      %s238 = smul.u32 3, %s237
      %p239 = scmp.lt.s32.totalorder %s20, 1
      %s240 = scalar_select %p239, %s20, 1
      %p241 = scmp.lt.s32.totalorder %s238, 5
      %s242 = scalar_select %p241, %s238, 5
      %s243 = smul.addr %s240, 6
      %s244 = sadd.s32 %s242, %s243
      %s245 = smul.addr %s244, 2
      %s246 = scalar_lea.vmem %s1, %s245
      %p247 = pneg %p87
      %p248 = pneg %p84
      %p249 = scmp.lt.s32.totalorder %s21, 0
      %s250 = scalar_select %p249, %s21, 0
      %s251 = smul.addr %s250, 4
      %s252 = scalar_lea.vmem %s2, %s251
      %p253 = pneg %p113
      %p254 = pneg %p110
      %p255 = pneg %p134
      %p256 = pneg %p131
      %p257 = pneg %p162
      %p258 = pneg %p159
      %p259 = scmp.lt.s32.totalorder %s20, 1
      %s260 = scalar_select %p259, %s20, 1
      %p261 = scmp.lt.s32.totalorder %s21, 0
      %s262 = scalar_select %p261, %s21, 0
      %s263 = smul.addr %s262, 3
      %s264 = smul.addr %s260, 3
      %s265 = sadd.s32 %s263, %s264
      %s266 = smul.addr %s265, 4
      %s267 = scalar_lea.vmem %s4, %s266
      %s268 = smul.u32 3, %s22
      %p269 = scmp.lt.s32.totalorder %s20, 1
      %s270 = scalar_select %p269, %s20, 1
      %p271 = scmp.lt.s32.totalorder %s268, 5
      %s272 = scalar_select %p271, %s268, 5
      %s273 = smul.addr %s270, 6
      %s274 = sadd.s32 %s272, %s273
      %s275 = smul.addr %s274, 2
      %s276 = scalar_lea.vmem %s0, %s275
      %s277 = smul.u32 3, %s22
      %s278 = sadd.s32 %s22, 1
      %s279 = smul.u32 3, %s278
      %p280 = scmp.lt.s32.totalorder %s20, 1
      %s281 = scalar_select %p280, %s20, 1
      %p282 = scmp.lt.s32.totalorder %s279, 5
      %s283 = scalar_select %p282, %s279, 5
      %s284 = smul.addr %s281, 6
      %s285 = sadd.s32 %s283, %s284
      %s286 = smul.addr %s285, 2
      %s287 = scalar_lea.vmem %s1, %s286
      %s288 = sadd.s32 %s22, 1
      %s289 = smul.u32 3, %s288
      %p290 = scmp.lt.s32.totalorder %s21, 0
      %s291 = scalar_select %p290, %s21, 0
      %s292 = smul.addr %s291, 4
      %s293 = scalar_lea.vmem %s2, %s292
      %p294 = scmp.lt.s32.totalorder %s20, 1
      %s295 = scalar_select %p294, %s20, 1
      %p296 = scmp.lt.s32.totalorder %s21, 0
      %s297 = scalar_select %p296, %s21, 0
      %s298 = smul.addr %s297, 3
      %s299 = smul.addr %s295, 3
      %s300 = sadd.s32 %s298, %s299
      %s301 = smul.addr %s300, 4
      %s302 = scalar_lea.vmem %s4, %s301
      %p304 = scmp.eq.s32.totalorder %s22, 0
      // Predicated region
      $region37: #{conv2d_block.1} parent=35 // pred_check
        %p305 = pneg %p304
      $region38: #{conv2d_block.1} parent=35 // pred_check_branch
        %307 = sbr.rel (%p305) target = $region40
      $region39: #{conv2d_block.1} parent=35 // pred_region
        %vm308 = vcmask 7168
        %309 = vst.msk [vmem:[#allocation3] sm:$0xff] %vm308, 0.0
      $region40: #{conv2d_block.1} parent=35 // pred_fallthru
        _
      %v310 = vld [vmem:[%s276] sm:$0x3f]
      %v311 = vld [vmem:[%s287] sm:$0x3f]
      %v313 = vcombine.high %v310, %v310
      %v315 = vunpack.c.l.s4 1983009808
      %v316 = vunpack.c.0.s8 %v315
      %v317 = vlaneseq
      %v318 = vshrl.u32 %v317, 7
      %v319 = vsub.s32 %v316, %v318
      %v320 = vrot.slane %v310, %v319
      %v322 = vunpack.c.l.s4 1983009808
      %v323 = vunpack.c.0.s8 %v322
      %v324 = vlaneseq
      %v325 = vshrl.u32 %v324, 7
      %v326 = vsub.s32 %v323, %v325
      %v327 = vrot.slane %v313, %v326
      %v328 = vcombine.high %v320, %v320
      %v331 = vunpack.c.l.s4 1983009808
      %v332 = vunpack.c.0.s8 %v331
      %v333 = vlaneseq
      %v334 = vshrl.u32 %v333, 7
      %v335 = vsub.s32 %v332, %v334
      %v336 = vrot.slane %v311, %v335
      %337 = vst [vmem:[#allocation2] sm:$0xff] 0.0
      %338 = vst [vmem:[#allocation2 + $0x8] sm:$0xff] 0.0
      %339 = vst [vmem:[#allocation2 + $0x10] sm:$0xff] 0.0
      %v340 = vld [vmem:[#allocation2] sm:$0xff]
      %v341 = vld [vmem:[#allocation2 + $0x8] sm:$0xff]
      %v342 = vld [vmem:[#allocation2 + $0x10] sm:$0xff]
      %v343 = vld [vmem:[%s293] sm:$0xf]
      %vm344 = vcmask 31744
      %v346 = vsel %vm344, %v343, 0
      %vm348 = vcmask 1041408
      %v350 = vsel %vm348, %v320, 0
      %v353 = vsel %vm348, %v328, 0
      %v356 = vsel %vm348, %v327, 0
      %358 = vmatprep.subr.bf16.mxu0 %v353
      %359 = vmatpush1.bf16.msra.mxu0 %v350
      %360 = vmatprep.subr.bf16.mxu0 0
      %361 = vmatpush1.bf16.msra.mxu0 0
      %362 = vmatprep.subr.bf16.mxu0 0
      %363 = vmatpush1.bf16.msra.mxu0 0
      %364 = vmatprep.subr.bf16.mxu0 0
      %365 = vmatpush1.bf16.msra.mxu0 0
      %366 = vmatprep.subr.bf16.mxu0 0
      %367 = vmatpush1.bf16.msra.mxu0 0
      %368 = vmatprep.subr.bf16.mxu0 0
      %369 = vmatpush1.bf16.msra.mxu0 0
      %370 = vmatprep.subr.bf16.mxu0 0
      %371 = vmatpush1.bf16.msra.mxu0 0
      %372 = vmatprep.subr.bf16.mxu0 0
      %373 = vmatpush1.bf16.msra.mxu0 0
      %374 = vmatprep.subr.bf16.mxu0 0
      %375 = vmatpush1.bf16.msra.mxu0 0
      %376 = vmatprep.subr.bf16.mxu0 0
      %377 = vmatpush1.bf16.msra.mxu0 0
      %378 = vmatprep.subr.bf16.mxu0 0
      %379 = vmatpush1.bf16.msra.mxu0 0
      %380 = vmatprep.subr.bf16.mxu0 0
      %381 = vmatpush1.bf16.msra.mxu0 0
      %382 = vmatprep.subr.bf16.mxu0 0
      %383 = vmatpush1.bf16.msra.mxu0 0
      %384 = vmatprep.subr.bf16.mxu0 0
      %385 = vmatpush1.bf16.msra.mxu0 0
      %386 = vmatprep.subr.bf16.mxu0 0
      %387 = vmatpush1.bf16.msra.mxu0 0
      %388 = vmatprep.subr.bf16.mxu0 0
      %389 = vmatpush1.bf16.msra.mxu0 0
      %390 = vmatprep.mubr.bf16.mxu0 0
      %391 = vmatmul.mubr.bf16.gmra.mrb[0].mxu0 %v346
      %v392 = vpop.f32.mrb[0].mxu0
      %v393 = vadd.f32 0.0, %v392
      %v394 = vpop.f32.mrb[0].mxu0
      %v395 = vadd.f32 0.0, %v394
      %v396 = vpop.f32.mrb[0].mxu0
      %v397 = vpop.f32.mrb[0].mxu0
      %398 = vdwg.mxu0
      %399 = vmatprep.subr.bf16.mxu0 0
      %400 = vmatpush1.bf16.msra.mxu0 %v356
      %401 = vmatprep.subr.bf16.mxu0 0
      %402 = vmatpush1.bf16.msra.mxu0 0
      %403 = vmatprep.subr.bf16.mxu0 0
      %404 = vmatpush1.bf16.msra.mxu0 0
      %405 = vmatprep.subr.bf16.mxu0 0
      %406 = vmatpush1.bf16.msra.mxu0 0
      %407 = vmatprep.subr.bf16.mxu0 0
      %408 = vmatpush1.bf16.msra.mxu0 0
      %409 = vmatprep.subr.bf16.mxu0 0
      %410 = vmatpush1.bf16.msra.mxu0 0
      %411 = vmatprep.subr.bf16.mxu0 0
      %412 = vmatpush1.bf16.msra.mxu0 0
      %413 = vmatprep.subr.bf16.mxu0 0
      %414 = vmatpush1.bf16.msra.mxu0 0
      %415 = vmatprep.subr.bf16.mxu0 0
      %416 = vmatpush1.bf16.msra.mxu0 0
      %417 = vmatprep.subr.bf16.mxu0 0
      %418 = vmatpush1.bf16.msra.mxu0 0
      %419 = vmatprep.subr.bf16.mxu0 0
      %420 = vmatpush1.bf16.msra.mxu0 0
      %421 = vmatprep.subr.bf16.mxu0 0
      %422 = vmatpush1.bf16.msra.mxu0 0
      %423 = vmatprep.subr.bf16.mxu0 0
      %424 = vmatpush1.bf16.msra.mxu0 0
      %425 = vmatprep.subr.bf16.mxu0 0
      %426 = vmatpush1.bf16.msra.mxu0 0
      %427 = vmatprep.subr.bf16.mxu0 0
      %428 = vmatpush1.bf16.msra.mxu0 0
      %429 = vmatprep.subr.bf16.mxu0 0
      %430 = vmatpush1.bf16.msra.mxu0 0
      %431 = vmatprep.mubr.bf16.mxu0 0
      %432 = vmatmul.mubr.bf16.gmra.mrb[0].mxu0 %v346
      %v433 = vpop.f32.mrb[0].mxu0
      %v434 = vadd.f32 0.0, %v433
      %v435 = vpop.f32.mrb[0].mxu0
      %v436 = vpop.f32.mrb[0].mxu0
      %v437 = vpop.f32.mrb[0].mxu0
      %438 = vdwg.mxu0
      %v439 = vadd.f32 %v340, %v393
      %v440 = vadd.f32 %v341, %v395
      %v441 = vadd.f32 %v342, %v434
      %442 = vst [vmem:[#allocation2] sm:$0xff] %v439
      %443 = vst [vmem:[#allocation2 + $0x8] sm:$0xff] %v440
      %444 = vst [vmem:[#allocation2 + $0x10] sm:$0xff] %v441
      %v445 = vld [vmem:[#allocation2] sm:$0xff]
      %v446 = vld [vmem:[#allocation2 + $0x8] sm:$0xff]
      %v447 = vld [vmem:[#allocation2 + $0x10] sm:$0xff]
      %s448 = scalar_lea.vmem %s293, 4
      %v449 = vld [vmem:[%s448] sm:$0xf]
      %450 = vrot.lane.b32.xlu0 %v320, 127
      %v451 = vpop.permute.xlu0 %450
      %452 = vrot.lane.b32.xlu0 %v328, 127
      %v453 = vpop.permute.xlu0 %452
      %454 = vrot.lane.b32.xlu0 %v327, 127
      %v455 = vpop.permute.xlu0 %454
      %456 = vrot.lane.b32.xlu0 %v336, 127
      %v457 = vpop.permute.xlu0 %456
      %vm458 = vcmask 1039360
      %v459 = vsel %vm458, %v451, %v453
      %v460 = vsel %vm458, %v453, %v455
      %v461 = vsel %vm458, %v455, %v457
      %v463 = vsel %vm344, %v449, 0
      %v466 = vsel %vm348, %v459, 0
      %v469 = vsel %vm348, %v460, 0
      %v472 = vsel %vm348, %v461, 0
      %474 = vmatprep.subr.bf16.mxu0 %v469
      %475 = vmatpush1.bf16.msra.mxu0 %v466
      %476 = vmatprep.subr.bf16.mxu0 0
      %477 = vmatpush1.bf16.msra.mxu0 0
      %478 = vmatprep.subr.bf16.mxu0 0
      %479 = vmatpush1.bf16.msra.mxu0 0
      %480 = vmatprep.subr.bf16.mxu0 0
      %481 = vmatpush1.bf16.msra.mxu0 0
      %482 = vmatprep.subr.bf16.mxu0 0
      %483 = vmatpush1.bf16.msra.mxu0 0
      %484 = vmatprep.subr.bf16.mxu0 0
      %485 = vmatpush1.bf16.msra.mxu0 0
      %486 = vmatprep.subr.bf16.mxu0 0
      %487 = vmatpush1.bf16.msra.mxu0 0
      %488 = vmatprep.subr.bf16.mxu0 0
      %489 = vmatpush1.bf16.msra.mxu0 0
      %490 = vmatprep.subr.bf16.mxu0 0
      %491 = vmatpush1.bf16.msra.mxu0 0
      %492 = vmatprep.subr.bf16.mxu0 0
      %493 = vmatpush1.bf16.msra.mxu0 0
      %494 = vmatprep.subr.bf16.mxu0 0
      %495 = vmatpush1.bf16.msra.mxu0 0
      %496 = vmatprep.subr.bf16.mxu0 0
      %497 = vmatpush1.bf16.msra.mxu0 0
      %498 = vmatprep.subr.bf16.mxu0 0
      %499 = vmatpush1.bf16.msra.mxu0 0
      %500 = vmatprep.subr.bf16.mxu0 0
      %501 = vmatpush1.bf16.msra.mxu0 0
      %502 = vmatprep.subr.bf16.mxu0 0
      %503 = vmatpush1.bf16.msra.mxu0 0
      %504 = vmatprep.subr.bf16.mxu0 0
      %505 = vmatpush1.bf16.msra.mxu0 0
      %506 = vmatprep.mubr.bf16.mxu0 0
      %507 = vmatmul.mubr.bf16.gmra.mrb[0].mxu0 %v463
      %v508 = vpop.f32.mrb[0].mxu0
      %v509 = vadd.f32 0.0, %v508
      %v510 = vpop.f32.mrb[0].mxu0
      %v511 = vadd.f32 0.0, %v510
      %v512 = vpop.f32.mrb[0].mxu0
      %v513 = vpop.f32.mrb[0].mxu0
      %514 = vdwg.mxu0
      %515 = vmatprep.subr.bf16.mxu0 0
      %516 = vmatpush1.bf16.msra.mxu0 %v472
      %517 = vmatprep.subr.bf16.mxu0 0
      %518 = vmatpush1.bf16.msra.mxu0 0
      %519 = vmatprep.subr.bf16.mxu0 0
      %520 = vmatpush1.bf16.msra.mxu0 0
      %521 = vmatprep.subr.bf16.mxu0 0
      %522 = vmatpush1.bf16.msra.mxu0 0
      %523 = vmatprep.subr.bf16.mxu0 0
      %524 = vmatpush1.bf16.msra.mxu0 0
      %525 = vmatprep.subr.bf16.mxu0 0
      %526 = vmatpush1.bf16.msra.mxu0 0
      %527 = vmatprep.subr.bf16.mxu0 0
      %528 = vmatpush1.bf16.msra.mxu0 0
      %529 = vmatprep.subr.bf16.mxu0 0
      %530 = vmatpush1.bf16.msra.mxu0 0
      %531 = vmatprep.subr.bf16.mxu0 0
      %532 = vmatpush1.bf16.msra.mxu0 0
      %533 = vmatprep.subr.bf16.mxu0 0
      %534 = vmatpush1.bf16.msra.mxu0 0
      %535 = vmatprep.subr.bf16.mxu0 0
      %536 = vmatpush1.bf16.msra.mxu0 0
      %537 = vmatprep.subr.bf16.mxu0 0
      %538 = vmatpush1.bf16.msra.mxu0 0
      %539 = vmatprep.subr.bf16.mxu0 0
      %540 = vmatpush1.bf16.msra.mxu0 0
      %541 = vmatprep.subr.bf16.mxu0 0
      %542 = vmatpush1.bf16.msra.mxu0 0
      %543 = vmatprep.subr.bf16.mxu0 0
      %544 = vmatpush1.bf16.msra.mxu0 0
      %545 = vmatprep.subr.bf16.mxu0 0
      %546 = vmatpush1.bf16.msra.mxu0 0
      %547 = vmatprep.mubr.bf16.mxu0 0
      %548 = vmatmul.mubr.bf16.gmra.mrb[0].mxu0 %v463
      %v549 = vpop.f32.mrb[0].mxu0
      %v550 = vadd.f32 0.0, %v549
      %v551 = vpop.f32.mrb[0].mxu0
      %v552 = vpop.f32.mrb[0].mxu0
      %v553 = vpop.f32.mrb[0].mxu0
      %554 = vdwg.mxu0
      %v555 = vadd.f32 %v445, %v509
      %v556 = vadd.f32 %v446, %v511
      %v557 = vadd.f32 %v447, %v550
      %558 = vst [vmem:[#allocation2] sm:$0xff] %v555
      %559 = vst [vmem:[#allocation2 + $0x8] sm:$0xff] %v556
      %560 = vst [vmem:[#allocation2 + $0x10] sm:$0xff] %v557
      %v561 = vld [vmem:[#allocation2] sm:$0xff]
      %v562 = vld [vmem:[#allocation2 + $0x8] sm:$0xff]
      %v563 = vld [vmem:[#allocation2 + $0x10] sm:$0xff]
      %s564 = scalar_lea.vmem %s293, 8
      %v565 = vld [vmem:[%s564] sm:$0xf]
      %566 = vrot.lane.b32.xlu0 %v320, 126
      %v567 = vpop.permute.xlu0 %566
      %568 = vrot.lane.b32.xlu0 %v328, 126
      %v569 = vpop.permute.xlu0 %568
      %570 = vrot.lane.b32.xlu0 %v327, 126
      %v571 = vpop.permute.xlu0 %570
      %572 = vrot.lane.b32.xlu0 %v336, 126
      %v573 = vpop.permute.xlu0 %572
      %vm574 = vcmask 1031168
      %v575 = vsel %vm574, %v567, %v569
      %v576 = vsel %vm574, %v569, %v571
      %v577 = vsel %vm574, %v571, %v573
      %v579 = vsel %vm344, %v565, 0
      %v582 = vsel %vm348, %v575, 0
      %v585 = vsel %vm348, %v576, 0
      %v588 = vsel %vm348, %v577, 0
      %590 = vmatprep.subr.bf16.mxu0 %v585
      %591 = vmatpush1.bf16.msra.mxu0 %v582
      %592 = vmatprep.subr.bf16.mxu0 0
      %593 = vmatpush1.bf16.msra.mxu0 0
      %594 = vmatprep.subr.bf16.mxu0 0
      %595 = vmatpush1.bf16.msra.mxu0 0
      %596 = vmatprep.subr.bf16.mxu0 0
      %597 = vmatpush1.bf16.msra.mxu0 0
      %598 = vmatprep.subr.bf16.mxu0 0
      %599 = vmatpush1.bf16.msra.mxu0 0
      %600 = vmatprep.subr.bf16.mxu0 0
      %601 = vmatpush1.bf16.msra.mxu0 0
      %602 = vmatprep.subr.bf16.mxu0 0
      %603 = vmatpush1.bf16.msra.mxu0 0
      %604 = vmatprep.subr.bf16.mxu0 0
      %605 = vmatpush1.bf16.msra.mxu0 0
      %606 = vmatprep.subr.bf16.mxu0 0
      %607 = vmatpush1.bf16.msra.mxu0 0
      %608 = vmatprep.subr.bf16.mxu0 0
      %609 = vmatpush1.bf16.msra.mxu0 0
      %610 = vmatprep.subr.bf16.mxu0 0
      %611 = vmatpush1.bf16.msra.mxu0 0
      %612 = vmatprep.subr.bf16.mxu0 0
      %613 = vmatpush1.bf16.msra.mxu0 0
      %614 = vmatprep.subr.bf16.mxu0 0
      %615 = vmatpush1.bf16.msra.mxu0 0
      %616 = vmatprep.subr.bf16.mxu0 0
      %617 = vmatpush1.bf16.msra.mxu0 0
      %618 = vmatprep.subr.bf16.mxu0 0
      %619 = vmatpush1.bf16.msra.mxu0 0
      %620 = vmatprep.subr.bf16.mxu0 0
      %621 = vmatpush1.bf16.msra.mxu0 0
      %622 = vmatprep.mubr.bf16.mxu0 0
      %623 = vmatmul.mubr.bf16.gmra.mrb[0].mxu0 %v579
      %v624 = vpop.f32.mrb[0].mxu0
      %v625 = vadd.f32 0.0, %v624
      %v626 = vpop.f32.mrb[0].mxu0
      %v627 = vadd.f32 0.0, %v626
      %v628 = vpop.f32.mrb[0].mxu0
      %v629 = vpop.f32.mrb[0].mxu0
      %630 = vdwg.mxu0
      %631 = vmatprep.subr.bf16.mxu0 0
      %632 = vmatpush1.bf16.msra.mxu0 %v588
      %633 = vmatprep.subr.bf16.mxu0 0
      %634 = vmatpush1.bf16.msra.mxu0 0
      %635 = vmatprep.subr.bf16.mxu0 0
      %636 = vmatpush1.bf16.msra.mxu0 0
      %637 = vmatprep.subr.bf16.mxu0 0
      %638 = vmatpush1.bf16.msra.mxu0 0
      %639 = vmatprep.subr.bf16.mxu0 0
      %640 = vmatpush1.bf16.msra.mxu0 0
      %641 = vmatprep.subr.bf16.mxu0 0
      %642 = vmatpush1.bf16.msra.mxu0 0
      %643 = vmatprep.subr.bf16.mxu0 0
      %644 = vmatpush1.bf16.msra.mxu0 0
      %645 = vmatprep.subr.bf16.mxu0 0
      %646 = vmatpush1.bf16.msra.mxu0 0
      %647 = vmatprep.subr.bf16.mxu0 0
      %648 = vmatpush1.bf16.msra.mxu0 0
      %649 = vmatprep.subr.bf16.mxu0 0
      %650 = vmatpush1.bf16.msra.mxu0 0
      %651 = vmatprep.subr.bf16.mxu0 0
      %652 = vmatpush1.bf16.msra.mxu0 0
      %653 = vmatprep.subr.bf16.mxu0 0
      %654 = vmatpush1.bf16.msra.mxu0 0
      %655 = vmatprep.subr.bf16.mxu0 0
      %656 = vmatpush1.bf16.msra.mxu0 0
      %657 = vmatprep.subr.bf16.mxu0 0
      %658 = vmatpush1.bf16.msra.mxu0 0
      %659 = vmatprep.subr.bf16.mxu0 0
      %660 = vmatpush1.bf16.msra.mxu0 0
      %661 = vmatprep.subr.bf16.mxu0 0
      %662 = vmatpush1.bf16.msra.mxu0 0
      %663 = vmatprep.mubr.bf16.mxu0 0
      %664 = vmatmul.mubr.bf16.gmra.mrb[0].mxu0 %v579
      %v665 = vpop.f32.mrb[0].mxu0
      %v666 = vadd.f32 0.0, %v665
      %v667 = vpop.f32.mrb[0].mxu0
      %v668 = vpop.f32.mrb[0].mxu0
      %v669 = vpop.f32.mrb[0].mxu0
      %670 = vdwg.mxu0
      %v671 = vadd.f32 %v561, %v625
      %v672 = vadd.f32 %v562, %v627
      %v673 = vadd.f32 %v563, %v666
      %674 = vst [vmem:[#allocation2] sm:$0xff] %v671
      %675 = vst [vmem:[#allocation2 + $0x8] sm:$0xff] %v672
      %676 = vst [vmem:[#allocation2 + $0x10] sm:$0xff] %v673
      %v677 = vld [vmem:[#allocation2] sm:$0xff]
      %v678 = vld [vmem:[#allocation2 + $0x8] sm:$0xff]
      %v679 = vld [vmem:[#allocation2 + $0x10] sm:$0xff]
      %s680 = scalar_lea.vmem %s293, 12
      %v681 = vld [vmem:[%s680] sm:$0xf]
      %682 = vrot.lane.b32.xlu0 %v320, 110
      %v683 = vpop.permute.xlu0 %682
      %684 = vrot.lane.b32.xlu0 %v328, 110
      %v685 = vpop.permute.xlu0 %684
      %686 = vrot.lane.b32.xlu0 %v327, 110
      %v687 = vpop.permute.xlu0 %686
      %688 = vrot.lane.b32.xlu0 %v336, 110
      %v689 = vpop.permute.xlu0 %688
      %vm690 = vcmask 900096
      %v691 = vsel %vm690, %v683, %v685
      %v692 = vsel %vm690, %v685, %v687
      %v693 = vsel %vm690, %v687, %v689
      %v695 = vsel %vm344, %v681, 0
      %v698 = vsel %vm348, %v691, 0
      %v701 = vsel %vm348, %v692, 0
      %v704 = vsel %vm348, %v693, 0
      %706 = vmatprep.subr.bf16.mxu0 %v701
      %707 = vmatpush1.bf16.msra.mxu0 %v698
      %708 = vmatprep.subr.bf16.mxu0 0
      %709 = vmatpush1.bf16.msra.mxu0 0
      %710 = vmatprep.subr.bf16.mxu0 0
      %711 = vmatpush1.bf16.msra.mxu0 0
      %712 = vmatprep.subr.bf16.mxu0 0
      %713 = vmatpush1.bf16.msra.mxu0 0
      %714 = vmatprep.subr.bf16.mxu0 0
      %715 = vmatpush1.bf16.msra.mxu0 0
      %716 = vmatprep.subr.bf16.mxu0 0
      %717 = vmatpush1.bf16.msra.mxu0 0
      %718 = vmatprep.subr.bf16.mxu0 0
      %719 = vmatpush1.bf16.msra.mxu0 0
      %720 = vmatprep.subr.bf16.mxu0 0
      %721 = vmatpush1.bf16.msra.mxu0 0
      %722 = vmatprep.subr.bf16.mxu0 0
      %723 = vmatpush1.bf16.msra.mxu0 0
      %724 = vmatprep.subr.bf16.mxu0 0
      %725 = vmatpush1.bf16.msra.mxu0 0
      %726 = vmatprep.subr.bf16.mxu0 0
      %727 = vmatpush1.bf16.msra.mxu0 0
      %728 = vmatprep.subr.bf16.mxu0 0
      %729 = vmatpush1.bf16.msra.mxu0 0
      %730 = vmatprep.subr.bf16.mxu0 0
      %731 = vmatpush1.bf16.msra.mxu0 0
      %732 = vmatprep.subr.bf16.mxu0 0
      %733 = vmatpush1.bf16.msra.mxu0 0
      %734 = vmatprep.subr.bf16.mxu0 0
      %735 = vmatpush1.bf16.msra.mxu0 0
      %736 = vmatprep.subr.bf16.mxu0 0
      %737 = vmatpush1.bf16.msra.mxu0 0
      %738 = vmatprep.mubr.bf16.mxu0 0
      %739 = vmatmul.mubr.bf16.gmra.mrb[0].mxu0 %v695
      %v740 = vpop.f32.mrb[0].mxu0
      %v741 = vadd.f32 0.0, %v740
      %v742 = vpop.f32.mrb[0].mxu0
      %v743 = vadd.f32 0.0, %v742
      %v744 = vpop.f32.mrb[0].mxu0
      %v745 = vpop.f32.mrb[0].mxu0
      %746 = vdwg.mxu0
      %747 = vmatprep.subr.bf16.mxu0 0
      %748 = vmatpush1.bf16.msra.mxu0 %v704
      %749 = vmatprep.subr.bf16.mxu0 0
      %750 = vmatpush1.bf16.msra.mxu0 0
      %751 = vmatprep.subr.bf16.mxu0 0
      %752 = vmatpush1.bf16.msra.mxu0 0
      %753 = vmatprep.subr.bf16.mxu0 0
      %754 = vmatpush1.bf16.msra.mxu0 0
      %755 = vmatprep.subr.bf16.mxu0 0
      %756 = vmatpush1.bf16.msra.mxu0 0
      %757 = vmatprep.subr.bf16.mxu0 0
      %758 = vmatpush1.bf16.msra.mxu0 0
      %759 = vmatprep.subr.bf16.mxu0 0
      %760 = vmatpush1.bf16.msra.mxu0 0
      %761 = vmatprep.subr.bf16.mxu0 0
      %762 = vmatpush1.bf16.msra.mxu0 0
      %763 = vmatprep.subr.bf16.mxu0 0
      %764 = vmatpush1.bf16.msra.mxu0 0
      %765 = vmatprep.subr.bf16.mxu0 0
      %766 = vmatpush1.bf16.msra.mxu0 0
      %767 = vmatprep.subr.bf16.mxu0 0
      %768 = vmatpush1.bf16.msra.mxu0 0
      %769 = vmatprep.subr.bf16.mxu0 0
      %770 = vmatpush1.bf16.msra.mxu0 0
      %771 = vmatprep.subr.bf16.mxu0 0
      %772 = vmatpush1.bf16.msra.mxu0 0
      %773 = vmatprep.subr.bf16.mxu0 0
      %774 = vmatpush1.bf16.msra.mxu0 0
      %775 = vmatprep.subr.bf16.mxu0 0
      %776 = vmatpush1.bf16.msra.mxu0 0
      %777 = vmatprep.subr.bf16.mxu0 0
      %778 = vmatpush1.bf16.msra.mxu0 0
      %779 = vmatprep.mubr.bf16.mxu0 0
      %780 = vmatmul.mubr.bf16.gmra.mrb[0].mxu0 %v695
      %v781 = vpop.f32.mrb[0].mxu0
      %v782 = vadd.f32 0.0, %v781
      %v783 = vpop.f32.mrb[0].mxu0
      %v784 = vpop.f32.mrb[0].mxu0
      %v785 = vpop.f32.mrb[0].mxu0
      %786 = vdwg.mxu0
      %v787 = vadd.f32 %v677, %v741
      %v788 = vadd.f32 %v678, %v743
      %v789 = vadd.f32 %v679, %v782
      %790 = vst [vmem:[#allocation2] sm:$0xff] %v787
      %791 = vst [vmem:[#allocation2 + $0x8] sm:$0xff] %v788
      %792 = vst [vmem:[#allocation2 + $0x10] sm:$0xff] %v789
      %v793 = vld [vmem:[#allocation2] sm:$0xff]
      %v794 = vld [vmem:[#allocation2 + $0x8] sm:$0xff]
      %v795 = vld [vmem:[#allocation2 + $0x10] sm:$0xff]
      %s796 = scalar_lea.vmem %s293, 16
      %v797 = vld [vmem:[%s796] sm:$0xf]
      %798 = vrot.lane.b32.xlu0 %v320, 109
      %v799 = vpop.permute.xlu0 %798
      %800 = vrot.lane.b32.xlu0 %v328, 109
      %v801 = vpop.permute.xlu0 %800
      %802 = vrot.lane.b32.xlu0 %v327, 109
      %v803 = vpop.permute.xlu0 %802
      %804 = vrot.lane.b32.xlu0 %v336, 109
      %v805 = vpop.permute.xlu0 %804
      %vm806 = vcmask 891904
      %v807 = vsel %vm806, %v799, %v801
      %v808 = vsel %vm806, %v801, %v803
      %v809 = vsel %vm806, %v803, %v805
      %v811 = vsel %vm344, %v797, 0
      %v814 = vsel %vm348, %v807, 0
      %v817 = vsel %vm348, %v808, 0
      %v820 = vsel %vm348, %v809, 0
      %822 = vmatprep.subr.bf16.mxu0 %v817
      %823 = vmatpush1.bf16.msra.mxu0 %v814
      %824 = vmatprep.subr.bf16.mxu0 0
      %825 = vmatpush1.bf16.msra.mxu0 0
      %826 = vmatprep.subr.bf16.mxu0 0
      %827 = vmatpush1.bf16.msra.mxu0 0
      %828 = vmatprep.subr.bf16.mxu0 0
      %829 = vmatpush1.bf16.msra.mxu0 0
      %830 = vmatprep.subr.bf16.mxu0 0
      %831 = vmatpush1.bf16.msra.mxu0 0
      %832 = vmatprep.subr.bf16.mxu0 0
      %833 = vmatpush1.bf16.msra.mxu0 0
      %834 = vmatprep.subr.bf16.mxu0 0
      %835 = vmatpush1.bf16.msra.mxu0 0
      %836 = vmatprep.subr.bf16.mxu0 0
      %837 = vmatpush1.bf16.msra.mxu0 0
      %838 = vmatprep.subr.bf16.mxu0 0
      %839 = vmatpush1.bf16.msra.mxu0 0
      %840 = vmatprep.subr.bf16.mxu0 0
      %841 = vmatpush1.bf16.msra.mxu0 0
      %842 = vmatprep.subr.bf16.mxu0 0
      %843 = vmatpush1.bf16.msra.mxu0 0
      %844 = vmatprep.subr.bf16.mxu0 0
      %845 = vmatpush1.bf16.msra.mxu0 0
      %846 = vmatprep.subr.bf16.mxu0 0
      %847 = vmatpush1.bf16.msra.mxu0 0
      %848 = vmatprep.subr.bf16.mxu0 0
      %849 = vmatpush1.bf16.msra.mxu0 0
      %850 = vmatprep.subr.bf16.mxu0 0
      %851 = vmatpush1.bf16.msra.mxu0 0
      %852 = vmatprep.subr.bf16.mxu0 0
      %853 = vmatpush1.bf16.msra.mxu0 0
      %854 = vmatprep.mubr.bf16.mxu0 0
      %855 = vmatmul.mubr.bf16.gmra.mrb[0].mxu0 %v811
      %v856 = vpop.f32.mrb[0].mxu0
      %v857 = vadd.f32 0.0, %v856
      %v858 = vpop.f32.mrb[0].mxu0
      %v859 = vadd.f32 0.0, %v858
      %v860 = vpop.f32.mrb[0].mxu0
      %v861 = vpop.f32.mrb[0].mxu0
      %862 = vdwg.mxu0
      %863 = vmatprep.subr.bf16.mxu0 0
      %864 = vmatpush1.bf16.msra.mxu0 %v820
      %865 = vmatprep.subr.bf16.mxu0 0
      %866 = vmatpush1.bf16.msra.mxu0 0
      %867 = vmatprep.subr.bf16.mxu0 0
      %868 = vmatpush1.bf16.msra.mxu0 0
      %869 = vmatprep.subr.bf16.mxu0 0
      %870 = vmatpush1.bf16.msra.mxu0 0
      %871 = vmatprep.subr.bf16.mxu0 0
      %872 = vmatpush1.bf16.msra.mxu0 0
      %873 = vmatprep.subr.bf16.mxu0 0
      %874 = vmatpush1.bf16.msra.mxu0 0
      %875 = vmatprep.subr.bf16.mxu0 0
      %876 = vmatpush1.bf16.msra.mxu0 0
      %877 = vmatprep.subr.bf16.mxu0 0
      %878 = vmatpush1.bf16.msra.mxu0 0
      %879 = vmatprep.subr.bf16.mxu0 0
      %880 = vmatpush1.bf16.msra.mxu0 0
      %881 = vmatprep.subr.bf16.mxu0 0
      %882 = vmatpush1.bf16.msra.mxu0 0
      %883 = vmatprep.subr.bf16.mxu0 0
      %884 = vmatpush1.bf16.msra.mxu0 0
      %885 = vmatprep.subr.bf16.mxu0 0
      %886 = vmatpush1.bf16.msra.mxu0 0
      %887 = vmatprep.subr.bf16.mxu0 0
      %888 = vmatpush1.bf16.msra.mxu0 0
      %889 = vmatprep.subr.bf16.mxu0 0
      %890 = vmatpush1.bf16.msra.mxu0 0
      %891 = vmatprep.subr.bf16.mxu0 0
      %892 = vmatpush1.bf16.msra.mxu0 0
      %893 = vmatprep.subr.bf16.mxu0 0
      %894 = vmatpush1.bf16.msra.mxu0 0
      %895 = vmatprep.mubr.bf16.mxu0 0
      %896 = vmatmul.mubr.bf16.gmra.mrb[0].mxu0 %v811
      %v897 = vpop.f32.mrb[0].mxu0
      %v898 = vadd.f32 0.0, %v897
      %v899 = vpop.f32.mrb[0].mxu0
      %v900 = vpop.f32.mrb[0].mxu0
      %v901 = vpop.f32.mrb[0].mxu0
      %902 = vdwg.mxu0
      %v903 = vadd.f32 %v793, %v857
      %v904 = vadd.f32 %v794, %v859
      %v905 = vadd.f32 %v795, %v898
      %906 = vst [vmem:[#allocation2] sm:$0xff] %v903
      %907 = vst [vmem:[#allocation2 + $0x8] sm:$0xff] %v904
      %908 = vst [vmem:[#allocation2 + $0x10] sm:$0xff] %v905
      %v909 = vld [vmem:[#allocation2] sm:$0xff]
      %v910 = vld [vmem:[#allocation2 + $0x8] sm:$0xff]
      %v911 = vld [vmem:[#allocation2 + $0x10] sm:$0xff]
      %s912 = scalar_lea.vmem %s293, 20
      %v913 = vld [vmem:[%s912] sm:$0xf]
      %914 = vrot.lane.b32.xlu0 %v320, 108
      %v915 = vpop.permute.xlu0 %914
      %916 = vrot.lane.b32.xlu0 %v328, 108
      %v917 = vpop.permute.xlu0 %916
      %918 = vrot.lane.b32.xlu0 %v327, 108
      %v919 = vpop.permute.xlu0 %918
      %920 = vrot.lane.b32.xlu0 %v336, 108
      %v921 = vpop.permute.xlu0 %920
      %vm922 = vcmask 883712
      %v923 = vsel %vm922, %v915, %v917
      %v924 = vsel %vm922, %v917, %v919
      %v925 = vsel %vm922, %v919, %v921
      %v927 = vsel %vm344, %v913, 0
      %v930 = vsel %vm348, %v923, 0
      %v933 = vsel %vm348, %v924, 0
      %v936 = vsel %vm348, %v925, 0
      %938 = vmatprep.subr.bf16.mxu0 %v933
      %939 = vmatpush1.bf16.msra.mxu0 %v930
      %940 = vmatprep.subr.bf16.mxu0 0
      %941 = vmatpush1.bf16.msra.mxu0 0
      %942 = vmatprep.subr.bf16.mxu0 0
      %943 = vmatpush1.bf16.msra.mxu0 0
      %944 = vmatprep.subr.bf16.mxu0 0
      %945 = vmatpush1.bf16.msra.mxu0 0
      %946 = vmatprep.subr.bf16.mxu0 0
      %947 = vmatpush1.bf16.msra.mxu0 0
      %948 = vmatprep.subr.bf16.mxu0 0
      %949 = vmatpush1.bf16.msra.mxu0 0
      %950 = vmatprep.subr.bf16.mxu0 0
      %951 = vmatpush1.bf16.msra.mxu0 0
      %952 = vmatprep.subr.bf16.mxu0 0
      %953 = vmatpush1.bf16.msra.mxu0 0
      %954 = vmatprep.subr.bf16.mxu0 0
      %955 = vmatpush1.bf16.msra.mxu0 0
      %956 = vmatprep.subr.bf16.mxu0 0
      %957 = vmatpush1.bf16.msra.mxu0 0
      %958 = vmatprep.subr.bf16.mxu0 0
      %959 = vmatpush1.bf16.msra.mxu0 0
      %960 = vmatprep.subr.bf16.mxu0 0
      %961 = vmatpush1.bf16.msra.mxu0 0
      %962 = vmatprep.subr.bf16.mxu0 0
      %963 = vmatpush1.bf16.msra.mxu0 0
      %964 = vmatprep.subr.bf16.mxu0 0
      %965 = vmatpush1.bf16.msra.mxu0 0
      %966 = vmatprep.subr.bf16.mxu0 0
      %967 = vmatpush1.bf16.msra.mxu0 0
      %968 = vmatprep.subr.bf16.mxu0 0
      %969 = vmatpush1.bf16.msra.mxu0 0
      %970 = vmatprep.mubr.bf16.mxu0 0
      %971 = vmatmul.mubr.bf16.gmra.mrb[0].mxu0 %v927
      %v972 = vpop.f32.mrb[0].mxu0
      %v973 = vadd.f32 0.0, %v972
      %v974 = vpop.f32.mrb[0].mxu0
      %v975 = vadd.f32 0.0, %v974
      %v976 = vpop.f32.mrb[0].mxu0
      %v977 = vpop.f32.mrb[0].mxu0
      %978 = vdwg.mxu0
      %979 = vmatprep.subr.bf16.mxu0 0
      %980 = vmatpush1.bf16.msra.mxu0 %v936
      %981 = vmatprep.subr.bf16.mxu0 0
      %982 = vmatpush1.bf16.msra.mxu0 0
      %983 = vmatprep.subr.bf16.mxu0 0
      %984 = vmatpush1.bf16.msra.mxu0 0
      %985 = vmatprep.subr.bf16.mxu0 0
      %986 = vmatpush1.bf16.msra.mxu0 0
      %987 = vmatprep.subr.bf16.mxu0 0
      %988 = vmatpush1.bf16.msra.mxu0 0
      %989 = vmatprep.subr.bf16.mxu0 0
      %990 = vmatpush1.bf16.msra.mxu0 0
      %991 = vmatprep.subr.bf16.mxu0 0
      %992 = vmatpush1.bf16.msra.mxu0 0
      %993 = vmatprep.subr.bf16.mxu0 0
      %994 = vmatpush1.bf16.msra.mxu0 0
      %995 = vmatprep.subr.bf16.mxu0 0
      %996 = vmatpush1.bf16.msra.mxu0 0
      %997 = vmatprep.subr.bf16.mxu0 0
      %998 = vmatpush1.bf16.msra.mxu0 0
      %999 = vmatprep.subr.bf16.mxu0 0
      %1000 = vmatpush1.bf16.msra.mxu0 0
      %1001 = vmatprep.subr.bf16.mxu0 0
      %1002 = vmatpush1.bf16.msra.mxu0 0
      %1003 = vmatprep.subr.bf16.mxu0 0
      %1004 = vmatpush1.bf16.msra.mxu0 0
      %1005 = vmatprep.subr.bf16.mxu0 0
      %1006 = vmatpush1.bf16.msra.mxu0 0
      %1007 = vmatprep.subr.bf16.mxu0 0
      %1008 = vmatpush1.bf16.msra.mxu0 0
      %1009 = vmatprep.subr.bf16.mxu0 0
      %1010 = vmatpush1.bf16.msra.mxu0 0
      %1011 = vmatprep.mubr.bf16.mxu0 0
      %1012 = vmatmul.mubr.bf16.gmra.mrb[0].mxu0 %v927
      %v1013 = vpop.f32.mrb[0].mxu0
      %v1014 = vadd.f32 0.0, %v1013
      %v1015 = vpop.f32.mrb[0].mxu0
      %v1016 = vpop.f32.mrb[0].mxu0
      %v1017 = vpop.f32.mrb[0].mxu0
      %1018 = vdwg.mxu0
      %v1019 = vadd.f32 %v909, %v973
      %v1020 = vadd.f32 %v910, %v975
      %v1021 = vadd.f32 %v911, %v1014
      %1022 = vst [vmem:[#allocation2] sm:$0xff] %v1019
      %1023 = vst [vmem:[#allocation2 + $0x8] sm:$0xff] %v1020
      %1024 = vst [vmem:[#allocation2 + $0x10] sm:$0xff] %v1021
      %v1025 = vld [vmem:[#allocation2] sm:$0xff]
      %v1026 = vld [vmem:[#allocation2 + $0x8] sm:$0xff]
      %v1027 = vld [vmem:[#allocation2 + $0x10] sm:$0xff]
      %s1028 = scalar_lea.vmem %s293, 24
      %v1029 = vld [vmem:[%s1028] sm:$0xf]
      %1030 = vrot.lane.b32.xlu0 %v320, 92
      %v1031 = vpop.permute.xlu0 %1030
      %1032 = vrot.lane.b32.xlu0 %v328, 92
      %v1033 = vpop.permute.xlu0 %1032
      %1034 = vrot.lane.b32.xlu0 %v327, 92
      %v1035 = vpop.permute.xlu0 %1034
      %1036 = vrot.lane.b32.xlu0 %v336, 92
      %v1037 = vpop.permute.xlu0 %1036
      %vm1038 = vcmask 752640
      %v1039 = vsel %vm1038, %v1031, %v1033
      %v1040 = vsel %vm1038, %v1033, %v1035
      %v1041 = vsel %vm1038, %v1035, %v1037
      %v1043 = vsel %vm344, %v1029, 0
      %v1046 = vsel %vm348, %v1039, 0
      %v1049 = vsel %vm348, %v1040, 0
      %v1052 = vsel %vm348, %v1041, 0
      %1054 = vmatprep.subr.bf16.mxu0 %v1049
      %1055 = vmatpush1.bf16.msra.mxu0 %v1046
      %1056 = vmatprep.subr.bf16.mxu0 0
      %1057 = vmatpush1.bf16.msra.mxu0 0
      %1058 = vmatprep.subr.bf16.mxu0 0
      %1059 = vmatpush1.bf16.msra.mxu0 0
      %1060 = vmatprep.subr.bf16.mxu0 0
      %1061 = vmatpush1.bf16.msra.mxu0 0
      %1062 = vmatprep.subr.bf16.mxu0 0
      %1063 = vmatpush1.bf16.msra.mxu0 0
      %1064 = vmatprep.subr.bf16.mxu0 0
      %1065 = vmatpush1.bf16.msra.mxu0 0
      %1066 = vmatprep.subr.bf16.mxu0 0
      %1067 = vmatpush1.bf16.msra.mxu0 0
      %1068 = vmatprep.subr.bf16.mxu0 0
      %1069 = vmatpush1.bf16.msra.mxu0 0
      %1070 = vmatprep.subr.bf16.mxu0 0
      %1071 = vmatpush1.bf16.msra.mxu0 0
      %1072 = vmatprep.subr.bf16.mxu0 0
      %1073 = vmatpush1.bf16.msra.mxu0 0
      %1074 = vmatprep.subr.bf16.mxu0 0
      %1075 = vmatpush1.bf16.msra.mxu0 0
      %1076 = vmatprep.subr.bf16.mxu0 0
      %1077 = vmatpush1.bf16.msra.mxu0 0
      %1078 = vmatprep.subr.bf16.mxu0 0
      %1079 = vmatpush1.bf16.msra.mxu0 0
      %1080 = vmatprep.subr.bf16.mxu0 0
      %1081 = vmatpush1.bf16.msra.mxu0 0
      %1082 = vmatprep.subr.bf16.mxu0 0
      %1083 = vmatpush1.bf16.msra.mxu0 0
      %1084 = vmatprep.subr.bf16.mxu0 0
      %1085 = vmatpush1.bf16.msra.mxu0 0
      %1086 = vmatprep.mubr.bf16.mxu0 0
      %1087 = vmatmul.mubr.bf16.gmra.mrb[0].mxu0 %v1043
      %v1088 = vpop.f32.mrb[0].mxu0
      %v1089 = vadd.f32 0.0, %v1088
      %v1090 = vpop.f32.mrb[0].mxu0
      %v1091 = vadd.f32 0.0, %v1090
      %v1092 = vpop.f32.mrb[0].mxu0
      %v1093 = vpop.f32.mrb[0].mxu0
      %1094 = vdwg.mxu0
      %1095 = vmatprep.subr.bf16.mxu0 0
      %1096 = vmatpush1.bf16.msra.mxu0 %v1052
      %1097 = vmatprep.subr.bf16.mxu0 0
      %1098 = vmatpush1.bf16.msra.mxu0 0
      %1099 = vmatprep.subr.bf16.mxu0 0
      %1100 = vmatpush1.bf16.msra.mxu0 0
      %1101 = vmatprep.subr.bf16.mxu0 0
      %1102 = vmatpush1.bf16.msra.mxu0 0
      %1103 = vmatprep.subr.bf16.mxu0 0
      %1104 = vmatpush1.bf16.msra.mxu0 0
      %1105 = vmatprep.subr.bf16.mxu0 0
      %1106 = vmatpush1.bf16.msra.mxu0 0
      %1107 = vmatprep.subr.bf16.mxu0 0
      %1108 = vmatpush1.bf16.msra.mxu0 0
      %1109 = vmatprep.subr.bf16.mxu0 0
      %1110 = vmatpush1.bf16.msra.mxu0 0
      %1111 = vmatprep.subr.bf16.mxu0 0
      %1112 = vmatpush1.bf16.msra.mxu0 0
      %1113 = vmatprep.subr.bf16.mxu0 0
      %1114 = vmatpush1.bf16.msra.mxu0 0
      %1115 = vmatprep.subr.bf16.mxu0 0
      %1116 = vmatpush1.bf16.msra.mxu0 0
      %1117 = vmatprep.subr.bf16.mxu0 0
      %1118 = vmatpush1.bf16.msra.mxu0 0
      %1119 = vmatprep.subr.bf16.mxu0 0
      %1120 = vmatpush1.bf16.msra.mxu0 0
      %1121 = vmatprep.subr.bf16.mxu0 0
      %1122 = vmatpush1.bf16.msra.mxu0 0
      %1123 = vmatprep.subr.bf16.mxu0 0
      %1124 = vmatpush1.bf16.msra.mxu0 0
      %1125 = vmatprep.subr.bf16.mxu0 0
      %1126 = vmatpush1.bf16.msra.mxu0 0
      %1127 = vmatprep.mubr.bf16.mxu0 0
      %1128 = vmatmul.mubr.bf16.gmra.mrb[0].mxu0 %v1043
      %v1129 = vpop.f32.mrb[0].mxu0
      %v1130 = vadd.f32 0.0, %v1129
      %v1131 = vpop.f32.mrb[0].mxu0
      %v1132 = vpop.f32.mrb[0].mxu0
      %v1133 = vpop.f32.mrb[0].mxu0
      %1134 = vdwg.mxu0
      %v1135 = vadd.f32 %v1025, %v1089
      %v1136 = vadd.f32 %v1026, %v1091
      %v1137 = vadd.f32 %v1027, %v1130
      %1138 = vst [vmem:[#allocation2] sm:$0xff] %v1135
      %1139 = vst [vmem:[#allocation2 + $0x8] sm:$0xff] %v1136
      %1140 = vst [vmem:[#allocation2 + $0x10] sm:$0xff] %v1137
      %v1141 = vld [vmem:[#allocation2] sm:$0xff]
      %v1142 = vld [vmem:[#allocation2 + $0x8] sm:$0xff]
      %v1143 = vld [vmem:[#allocation2 + $0x10] sm:$0xff]
      %s1144 = scalar_lea.vmem %s293, 28
      %v1145 = vld [vmem:[%s1144] sm:$0xf]
      %1146 = vrot.lane.b32.xlu0 %v320, 91
      %v1147 = vpop.permute.xlu0 %1146
      %1148 = vrot.lane.b32.xlu0 %v328, 91
      %v1149 = vpop.permute.xlu0 %1148
      %1150 = vrot.lane.b32.xlu0 %v327, 91
      %v1151 = vpop.permute.xlu0 %1150
      %1152 = vrot.lane.b32.xlu0 %v336, 91
      %v1153 = vpop.permute.xlu0 %1152
      %vm1154 = vcmask 744448
      %v1155 = vsel %vm1154, %v1147, %v1149
      %v1156 = vsel %vm1154, %v1149, %v1151
      %v1157 = vsel %vm1154, %v1151, %v1153
      %v1159 = vsel %vm344, %v1145, 0
      %v1162 = vsel %vm348, %v1155, 0
      %v1165 = vsel %vm348, %v1156, 0
      %v1168 = vsel %vm348, %v1157, 0
      %1170 = vmatprep.subr.bf16.mxu0 %v1165
      %1171 = vmatpush1.bf16.msra.mxu0 %v1162
      %1172 = vmatprep.subr.bf16.mxu0 0
      %1173 = vmatpush1.bf16.msra.mxu0 0
      %1174 = vmatprep.subr.bf16.mxu0 0
      %1175 = vmatpush1.bf16.msra.mxu0 0
      %1176 = vmatprep.subr.bf16.mxu0 0
      %1177 = vmatpush1.bf16.msra.mxu0 0
      %1178 = vmatprep.subr.bf16.mxu0 0
      %1179 = vmatpush1.bf16.msra.mxu0 0
      %1180 = vmatprep.subr.bf16.mxu0 0
      %1181 = vmatpush1.bf16.msra.mxu0 0
      %1182 = vmatprep.subr.bf16.mxu0 0
      %1183 = vmatpush1.bf16.msra.mxu0 0
      %1184 = vmatprep.subr.bf16.mxu0 0
      %1185 = vmatpush1.bf16.msra.mxu0 0
      %1186 = vmatprep.subr.bf16.mxu0 0
      %1187 = vmatpush1.bf16.msra.mxu0 0
      %1188 = vmatprep.subr.bf16.mxu0 0
      %1189 = vmatpush1.bf16.msra.mxu0 0
      %1190 = vmatprep.subr.bf16.mxu0 0
      %1191 = vmatpush1.bf16.msra.mxu0 0
      %1192 = vmatprep.subr.bf16.mxu0 0
      %1193 = vmatpush1.bf16.msra.mxu0 0
      %1194 = vmatprep.subr.bf16.mxu0 0
      %1195 = vmatpush1.bf16.msra.mxu0 0
      %1196 = vmatprep.subr.bf16.mxu0 0
      %1197 = vmatpush1.bf16.msra.mxu0 0
      %1198 = vmatprep.subr.bf16.mxu0 0
      %1199 = vmatpush1.bf16.msra.mxu0 0
      %1200 = vmatprep.subr.bf16.mxu0 0
      %1201 = vmatpush1.bf16.msra.mxu0 0
      %1202 = vmatprep.mubr.bf16.mxu0 0
      %1203 = vmatmul.mubr.bf16.gmra.mrb[0].mxu0 %v1159
      %v1204 = vpop.f32.mrb[0].mxu0
      %v1205 = vadd.f32 0.0, %v1204
      %v1206 = vpop.f32.mrb[0].mxu0
      %v1207 = vadd.f32 0.0, %v1206
      %v1208 = vpop.f32.mrb[0].mxu0
      %v1209 = vpop.f32.mrb[0].mxu0
      %1210 = vdwg.mxu0
      %1211 = vmatprep.subr.bf16.mxu0 0
      %1212 = vmatpush1.bf16.msra.mxu0 %v1168
      %1213 = vmatprep.subr.bf16.mxu0 0
      %1214 = vmatpush1.bf16.msra.mxu0 0
      %1215 = vmatprep.subr.bf16.mxu0 0
      %1216 = vmatpush1.bf16.msra.mxu0 0
      %1217 = vmatprep.subr.bf16.mxu0 0
      %1218 = vmatpush1.bf16.msra.mxu0 0
      %1219 = vmatprep.subr.bf16.mxu0 0
      %1220 = vmatpush1.bf16.msra.mxu0 0
      %1221 = vmatprep.subr.bf16.mxu0 0
      %1222 = vmatpush1.bf16.msra.mxu0 0
      %1223 = vmatprep.subr.bf16.mxu0 0
      %1224 = vmatpush1.bf16.msra.mxu0 0
      %1225 = vmatprep.subr.bf16.mxu0 0
      %1226 = vmatpush1.bf16.msra.mxu0 0
      %1227 = vmatprep.subr.bf16.mxu0 0
      %1228 = vmatpush1.bf16.msra.mxu0 0
      %1229 = vmatprep.subr.bf16.mxu0 0
      %1230 = vmatpush1.bf16.msra.mxu0 0
      %1231 = vmatprep.subr.bf16.mxu0 0
      %1232 = vmatpush1.bf16.msra.mxu0 0
      %1233 = vmatprep.subr.bf16.mxu0 0
      %1234 = vmatpush1.bf16.msra.mxu0 0
      %1235 = vmatprep.subr.bf16.mxu0 0
      %1236 = vmatpush1.bf16.msra.mxu0 0
      %1237 = vmatprep.subr.bf16.mxu0 0
      %1238 = vmatpush1.bf16.msra.mxu0 0
      %1239 = vmatprep.subr.bf16.mxu0 0
      %1240 = vmatpush1.bf16.msra.mxu0 0
      %1241 = vmatprep.subr.bf16.mxu0 0
      %1242 = vmatpush1.bf16.msra.mxu0 0
      %1243 = vmatprep.mubr.bf16.mxu0 0
      %1244 = vmatmul.mubr.bf16.gmra.mrb[0].mxu0 %v1159
      %v1245 = vpop.f32.mrb[0].mxu0
      %v1246 = vadd.f32 0.0, %v1245
      %v1247 = vpop.f32.mrb[0].mxu0
      %v1248 = vpop.f32.mrb[0].mxu0
      %v1249 = vpop.f32.mrb[0].mxu0
      %1250 = vdwg.mxu0
      %v1251 = vadd.f32 %v1141, %v1205
      %v1252 = vadd.f32 %v1142, %v1207
      %v1253 = vadd.f32 %v1143, %v1246
      %1254 = vst [vmem:[#allocation2] sm:$0xff] %v1251
      %1255 = vst [vmem:[#allocation2 + $0x8] sm:$0xff] %v1252
      %1256 = vst [vmem:[#allocation2 + $0x10] sm:$0xff] %v1253
      %v1257 = vld [vmem:[#allocation2] sm:$0xff]
      %v1258 = vld [vmem:[#allocation2 + $0x8] sm:$0xff]
      %v1259 = vld [vmem:[#allocation2 + $0x10] sm:$0xff]
      %s1260 = scalar_lea.vmem %s293, 32
      %v1261 = vld [vmem:[%s1260] sm:$0xf]
      %1262 = vrot.lane.b32.xlu0 %v320, 90
      %v1263 = vpop.permute.xlu0 %1262
      %1264 = vrot.lane.b32.xlu0 %v328, 90
      %v1265 = vpop.permute.xlu0 %1264
      %1266 = vrot.lane.b32.xlu0 %v327, 90
      %v1267 = vpop.permute.xlu0 %1266
      %1268 = vrot.lane.b32.xlu0 %v336, 90
      %v1269 = vpop.permute.xlu0 %1268
      %vm1270 = vcmask 736256
      %v1271 = vsel %vm1270, %v1263, %v1265
      %v1272 = vsel %vm1270, %v1265, %v1267
      %v1273 = vsel %vm1270, %v1267, %v1269
      %v1275 = vsel %vm344, %v1261, 0
      %v1278 = vsel %vm348, %v1271, 0
      %v1281 = vsel %vm348, %v1272, 0
      %v1284 = vsel %vm348, %v1273, 0
      %1286 = vmatprep.subr.bf16.mxu0 %v1281
      %1287 = vmatpush1.bf16.msra.mxu0 %v1278
      %1288 = vmatprep.subr.bf16.mxu0 0
      %1289 = vmatpush1.bf16.msra.mxu0 0
      %1290 = vmatprep.subr.bf16.mxu0 0
      %1291 = vmatpush1.bf16.msra.mxu0 0
      %1292 = vmatprep.subr.bf16.mxu0 0
      %1293 = vmatpush1.bf16.msra.mxu0 0
      %1294 = vmatprep.subr.bf16.mxu0 0
      %1295 = vmatpush1.bf16.msra.mxu0 0
      %1296 = vmatprep.subr.bf16.mxu0 0
      %1297 = vmatpush1.bf16.msra.mxu0 0
      %1298 = vmatprep.subr.bf16.mxu0 0
      %1299 = vmatpush1.bf16.msra.mxu0 0
      %1300 = vmatprep.subr.bf16.mxu0 0
      %1301 = vmatpush1.bf16.msra.mxu0 0
      %1302 = vmatprep.subr.bf16.mxu0 0
      %1303 = vmatpush1.bf16.msra.mxu0 0
      %1304 = vmatprep.subr.bf16.mxu0 0
      %1305 = vmatpush1.bf16.msra.mxu0 0
      %1306 = vmatprep.subr.bf16.mxu0 0
      %1307 = vmatpush1.bf16.msra.mxu0 0
      %1308 = vmatprep.subr.bf16.mxu0 0
      %1309 = vmatpush1.bf16.msra.mxu0 0
      %1310 = vmatprep.subr.bf16.mxu0 0
      %1311 = vmatpush1.bf16.msra.mxu0 0
      %1312 = vmatprep.subr.bf16.mxu0 0
      %1313 = vmatpush1.bf16.msra.mxu0 0
      %1314 = vmatprep.subr.bf16.mxu0 0
      %1315 = vmatpush1.bf16.msra.mxu0 0
      %1316 = vmatprep.subr.bf16.mxu0 0
      %1317 = vmatpush1.bf16.msra.mxu0 0
      %1318 = vmatprep.mubr.bf16.mxu0 0
      %1319 = vmatmul.mubr.bf16.gmra.mrb[0].mxu0 %v1275
      %v1320 = vpop.f32.mrb[0].mxu0
      %v1321 = vadd.f32 0.0, %v1320
      %v1322 = vpop.f32.mrb[0].mxu0
      %v1323 = vadd.f32 0.0, %v1322
      %v1324 = vpop.f32.mrb[0].mxu0
      %v1325 = vpop.f32.mrb[0].mxu0
      %1326 = vdwg.mxu0
      %1327 = vmatprep.subr.bf16.mxu0 0
      %1328 = vmatpush1.bf16.msra.mxu0 %v1284
      %1329 = vmatprep.subr.bf16.mxu0 0
      %1330 = vmatpush1.bf16.msra.mxu0 0
      %1331 = vmatprep.subr.bf16.mxu0 0
      %1332 = vmatpush1.bf16.msra.mxu0 0
      %1333 = vmatprep.subr.bf16.mxu0 0
      %1334 = vmatpush1.bf16.msra.mxu0 0
      %1335 = vmatprep.subr.bf16.mxu0 0
      %1336 = vmatpush1.bf16.msra.mxu0 0
      %1337 = vmatprep.subr.bf16.mxu0 0
      %1338 = vmatpush1.bf16.msra.mxu0 0
      %1339 = vmatprep.subr.bf16.mxu0 0
      %1340 = vmatpush1.bf16.msra.mxu0 0
      %1341 = vmatprep.subr.bf16.mxu0 0
      %1342 = vmatpush1.bf16.msra.mxu0 0
      %1343 = vmatprep.subr.bf16.mxu0 0
      %1344 = vmatpush1.bf16.msra.mxu0 0
      %1345 = vmatprep.subr.bf16.mxu0 0
      %1346 = vmatpush1.bf16.msra.mxu0 0
      %1347 = vmatprep.subr.bf16.mxu0 0
      %1348 = vmatpush1.bf16.msra.mxu0 0
      %1349 = vmatprep.subr.bf16.mxu0 0
      %1350 = vmatpush1.bf16.msra.mxu0 0
      %1351 = vmatprep.subr.bf16.mxu0 0
      %1352 = vmatpush1.bf16.msra.mxu0 0
      %1353 = vmatprep.subr.bf16.mxu0 0
      %1354 = vmatpush1.bf16.msra.mxu0 0
      %1355 = vmatprep.subr.bf16.mxu0 0
      %1356 = vmatpush1.bf16.msra.mxu0 0
      %1357 = vmatprep.subr.bf16.mxu0 0
      %1358 = vmatpush1.bf16.msra.mxu0 0
      %1359 = vmatprep.mubr.bf16.mxu0 0
      %1360 = vmatmul.mubr.bf16.gmra.mrb[0].mxu0 %v1275
      %v1361 = vpop.f32.mrb[0].mxu0
      %v1362 = vadd.f32 0.0, %v1361
      %v1363 = vpop.f32.mrb[0].mxu0
      %v1364 = vpop.f32.mrb[0].mxu0
      %v1365 = vpop.f32.mrb[0].mxu0
      %1366 = vdwg.mxu0
      %v1367 = vadd.f32 %v1257, %v1321
      %v1368 = vadd.f32 %v1258, %v1323
      %v1369 = vadd.f32 %v1259, %v1362
      %1370 = vst [vmem:[#allocation2] sm:$0xff] %v1367
      %1371 = vst [vmem:[#allocation2 + $0x8] sm:$0xff] %v1368
      %1372 = vst [vmem:[#allocation2 + $0x10] sm:$0xff] %v1369
      %s1373 = smul.u32 %s22, 384
      %v1374 = vld [vmem:[#allocation2] sm:$0xff]
      %v1375 = vld [vmem:[#allocation2 + $0x8] sm:$0xff]
      %v1376 = vld [vmem:[#allocation2 + $0x10] sm:$0xff]
      %s1377 = sshra.s32 %s1373, 7
      %s1378 = sand.u32 %s1373, 127
      %s1379 = scalar_lea.vmem %s3, %s1377
      %v1380 = vld [vmem:[%s1379] sm:$0x7]
      %v1381 = vld [vmem:[#allocation3] sm:$0xff]
      %v1383 = vlaneseq
      %v1384 = vshrl.u32 %v1383, 7
      %v1385 = vsub.s32 0, %v1384
      %v1386 = vrot.slane %v1380, %v1385
      %v1387 = vlaneseq
      %v1388 = vshrl.u32 %v1387, 7
      %v1389 = vsub.s32 1, %v1388
      %v1390 = vrot.slane %v1380, %v1389
      %v1391 = vlaneseq
      %v1392 = vshrl.u32 %v1391, 7
      %v1393 = vsub.s32 2, %v1392
      %v1394 = vrot.slane %v1380, %v1393
      %v1398 = vmul.f32 %v1374, %v1386
      %v1399 = vmul.f32 %v1375, %v1390
      %v1400 = vmul.f32 %v1376, %v1394
      %v1401 = vadd.f32 %v1398, %v1399
      %v1402 = vadd.f32 %v1401, %v1400
      %1403 = vadd.xlane.f32.xlu0 %v1402
      %v1404 = vpop.xlane.xlu0 %1403
      %v1405 = vadd.f32 %v1381, %v1404
      %vm1406 = vcmask 7168
      %1407 = vst.msk [vmem:[#allocation3] sm:$0xff] %vm1406, %v1405
      %v1408 = vpack.c.bf16 %v1374, %v1374
      %v1409 = vpack.c.bf16 %v1375, %v1375
      %v1410 = vpack.c.bf16 %v1376, %v1376
      %v1414 = vunpack.c.l.b16 %v1408
      %v1415 = vunpack.c.l.b16 %v1409
      %v1416 = vunpack.c.l.b16 %v1410
      %v1417 = vpack.c.b16 %v1415, %v1414
      %v1418 = vpack.c.b16 %v1416, %v1416
      %s1421 = smul.addr %s1377, 4
      %s1422 = scalar_lea.vmem %s302, %s1421
      %1423 = vst [vmem:[%s1422] sm:$0xff] %v1417
      %1424 = vst [vmem:[%s1422 + $0x8] sm:$0xf] %v1418
      // Predicated region
      $region41: #{conv2d_block.1} parent=35 // pred_check
        %p1425 = pneg %p304
      $region42: #{conv2d_block.1} parent=35 // pred_check_branch
        %1427 = sbr.rel (%p1425) target = $region44
      $region43: #{conv2d_block.1} parent=35 // pred_region
        %v1428 = vld [vmem:[#allocation3] sm:$0xff]
        %v1429 = vmul.f32 %v1428, 0.00390625
        %v1430 = vld [vmem:[%s302] sm:$0xff]
        %v1431 = vld [vmem:[%s302 + $0x8] sm:$0xf]
        %v1432 = vunpack.c.l.bf16 %v1430
        %v1433 = vunpack.c.h.bf16 %v1430
        %v1434 = vunpack.c.l.bf16 %v1431
        %1436 = vset.pattern.permute.xlu0 0
        %1437 = vperm.xlu0 %1436, %v1429
        %v1438 = vpop.permute.xlu0 %1437
        %v1440 = vsub.f32 %v1432, %v1438
        %v1441 = vsub.f32 %v1433, %v1438
        %v1442 = vsub.f32 %v1434, %v1438
        %v1443 = vld [vmem:[%s3] sm:$0x7]
        %v1445 = vlaneseq
        %v1446 = vshrl.u32 %v1445, 7
        %v1447 = vsub.s32 0, %v1446
        %v1448 = vrot.slane %v1443, %v1447
        %v1449 = vlaneseq
        %v1450 = vshrl.u32 %v1449, 7
        %v1451 = vsub.s32 1, %v1450
        %v1452 = vrot.slane %v1443, %v1451
        %v1453 = vlaneseq
        %v1454 = vshrl.u32 %v1453, 7
        %v1455 = vsub.s32 2, %v1454
        %v1456 = vrot.slane %v1443, %v1455
        %v1460 = vmul.f32 %v1440, %v1448
        %v1461 = vmul.f32 %v1441, %v1452
        %v1462 = vmul.f32 %v1442, %v1456
        %v1463 = vmul.f32 %v1460, %v1460
        %v1464 = vmul.f32 %v1461, %v1461
        %v1465 = vmul.f32 %v1462, %v1462
        %v1466 = vadd.f32 %v1463, %v1464
        %v1467 = vadd.f32 %v1466, %v1465
        %1468 = vadd.xlane.f32.xlu0 %v1467
        %v1469 = vpop.xlane.xlu0 %1468
        %v1470 = vadd.f32 %v1469, 0.0
        %v1471 = vmul.f32 %v1470, 0.00390625
        %v1472 = vadd.f32 %v1471, 1e-05
        %v1473 = vrsqrt.pop %v1472
        %v1474 = vmul.f32 %v1440, %v1473
        %v1475 = vmul.f32 %v1441, %v1473
        %v1476 = vmul.f32 %v1442, %v1473
        %v1477 = vxor.u32 %v1474, 2147483648
        %v1478 = vxor.u32 %v1475, 2147483648
        %v1479 = vxor.u32 %v1476, 2147483648
        %v1480 = vmul.f32 %v1477, 1.442695
        %v1481 = vpow.pop %v1480
        %v1482 = vmul.f32 %v1478, 1.442695
        %v1483 = vpow.pop %v1482
        %v1484 = vmul.f32 %v1479, 1.442695
        %v1485 = vpow.pop %v1484
        %v1486 = vadd.f32 %v1481, 1.0
        %v1487 = vadd.f32 %v1483, 1.0
        %v1488 = vadd.f32 %v1485, 1.0
        %v1489 = vrcp.pop %v1486
        %v1490 = vmul.f32 1.0, %v1489
        %v1491 = vrcp.pop %v1487
        %v1492 = vmul.f32 1.0, %v1491
        %v1493 = vrcp.pop %v1488
        %v1494 = vmul.f32 1.0, %v1493
        %v1495 = vmul.f32 %v1474, %v1490
        %v1496 = vmul.f32 %v1475, %v1492
        %v1497 = vmul.f32 %v1476, %v1494
        %v1498 = vpack.c.bf16 %v1495, %v1495
        %v1499 = vpack.c.bf16 %v1496, %v1496
        %v1500 = vpack.c.bf16 %v1497, %v1497
        %v1504 = vunpack.c.l.b16 %v1498
        %v1505 = vunpack.c.l.b16 %v1499
        %v1506 = vunpack.c.l.b16 %v1500
        %v1507 = vpack.c.b16 %v1505, %v1504
        %v1508 = vpack.c.b16 %v1506, %v1506
        %1511 = vst [vmem:[%s302] sm:$0xff] %v1507
        %1512 = vst [vmem:[%s302 + $0x8] sm:$0xf] %v1508
      $region44: #{conv2d_block.1} parent=35 // pred_fallthru
        _
      %p1513 = scmp.lt.s32.totalorder %s20, 1
      %s1514 = scalar_select %p1513, %s20, 1
      %p1515 = scmp.lt.s32.totalorder %s21, 0
      %s1516 = scalar_select %p1515, %s21, 0
      %s1517 = smul.addr %s1516, 3
      %s1518 = smul.addr %s1514, 3
      %s1519 = sadd.s32 %s1517, %s1518
      %s1520 = smul.addr %s1519, 4
      %s1521 = scalar_lea.vmem %s4, %s1520
      // Predicated region
      $region45: #{conv2d_block.1} parent=35 // pred_check
        %p1522 = pneg %p159
      $region46: #{conv2d_block.1} parent=35 // pred_check_branch
        %1524 = sbr.rel (%p1522) target = $region48
      $region47: #{conv2d_block.1} parent=35 // pred_region
        _
      $region48: #{conv2d_block.1} parent=35 // pred_fallthru
        _
    $region36: #{conv2d_block.1} parent=5 // pred_fallthru
      _
    %p1525 = scmp.le.s32.totalorder 2, %s10
    // Predicated region
    $region49: #{conv2d_block.1} parent=5 // pred_check
      %p1526 = pneg %p1525
    $region50: #{conv2d_block.1} parent=5 // pred_check_branch
      %1528 = sbr.rel (%p1526) target = $region52
    $region51: #{conv2d_block.1} parent=5 // pred_region
      %s1529 = ssub.s32 %s10, 2
      // Predicated region
      $region53: #{conv2d_block.1} parent=51 // pred_check
        %p1530 = pneg %p165
      $region54: #{conv2d_block.1} parent=51 // pred_check_branch
        %1532 = sbr.rel (%p1530) target = $region56
      $region55: #{conv2d_block.1} parent=51 // pred_region
        %p1533 = scmp.lt.s32.totalorder %s23, 1
        %s1534 = scalar_select %p1533, %s23, 1
        %p1535 = scmp.lt.s32.totalorder %s24, 0
        %s1536 = scalar_select %p1535, %s24, 0
        %s1537 = smul.addr %s1536, 3
        %s1538 = smul.addr %s1534, 3
        %s1539 = sadd.s32 %s1537, %s1538
        %s1540 = smul.addr %s1539, 4
        %s1541 = scalar_lea.vmem %s4, %s1540
      $region56: #{conv2d_block.1} parent=51 // pred_fallthru
        _
    $region52: #{conv2d_block.1} parent=5 // pred_fallthru
      _
  $region6: #{conv2d_block.1} parent=0 // loop_footer
    %s14 = sadd.s32 1, %s10
  $region7: #{conv2d_block.1} parent=0 // loop_footer_branch
    %9 = sbr.rel target = $region3
  $region8: #{conv2d_block.1} parent=0 // loop_exit
    _

</llo_original>
